<compile_context>
chip_gen: v7x
topology: tpu7x:2x2x1
jax: 0.10.0
libtpu: 0.0.40
codegen_flags: <defaults>
</compile_context>

<pallas_src>
import math
import jax
import jax.numpy as jnp
from jax.experimental import pallas as pl
from jax.experimental.pallas import tpu as pltpu

# ---- static sizes -----------------------------------------------------------
B, S, H = 2, 8, 32          # batch, seq, hidden
NH = 4                      # num attention heads
DH = H // NH                # head dim
INTER = 64                  # intermediate size
EPS = 1e-7                  # layer_norm_eps
T = B * S                   # flattened token count


def _layernorm(x, gamma, beta):
    # torch.nn.LayerNorm semantics (biased variance), over last dim.
    mu = jnp.mean(x, axis=-1, keepdims=True)
    var = jnp.mean((x - mu) ** 2, axis=-1, keepdims=True)
    return (x - mu) * jax.lax.rsqrt(var + EPS) * gamma + beta


# ---- single fused kernel: attention + SelfOutput + Intermediate + Output ----
def bert_layer_kernel(x_ref, m2_ref, wqkv_ref, qb_ref, vb_ref, wo_ref, bo_ref,
                      g1_ref, be1_ref, w1_ref, b1_ref, w2_ref, b2_ref,
                      g2_ref, be2_ref, out_ref):
    x = x_ref[...]                          # (T, H) flattened tokens
    mask = m2_ref[...] > 0.0                # (T, T) block-diagonal valid mask

    # -- DisentangledSelfAttention (std path, no relative attention) --
    qkv = jnp.dot(x, wqkv_ref[...], preferred_element_type=jnp.float32)   # (T, 3H)
    q = qkv[:, 0:H] + qb_ref[...]           # vectorized q_bias add (full H width)
    k = qkv[:, H:2 * H]
    v = qkv[:, 2 * H:3 * H] + vb_ref[...]   # vectorized v_bias add

    # head-major (NH, T, DH): cheap lane slices stacked along a new leading axis
    qh = jnp.stack([q[:, h * DH:(h + 1) * DH] for h in range(NH)], axis=0)
    kh = jnp.stack([k[:, h * DH:(h + 1) * DH] for h in range(NH)], axis=0)
    vh = jnp.stack([v[:, h * DH:(h + 1) * DH] for h in range(NH)], axis=0)

    scale = 1.0 / math.sqrt(DH)             # scale_factor = 1 (no relative attention)
    scores = jnp.einsum('hqd,hkd->hqk', qh, kh,
                        preferred_element_type=jnp.float32) * scale       # (NH, T, T)

    # XSoftmax: mask -> -inf, softmax over keys, re-mask probs to 0
    neg = jnp.finfo(scores.dtype).min
    mask3 = mask[None, :, :]                                              # (1, T, T)
    scores = jnp.where(mask3, scores, neg)
    smax = jnp.max(scores, axis=-1, keepdims=True)
    e = jnp.exp(scores - smax)
    probs = e / jnp.sum(e, axis=-1, keepdims=True)
    probs = jnp.where(mask3, probs, 0.0)

    ctx = jnp.einsum('hqk,hkd->hqd', probs, vh,
                     preferred_element_type=jnp.float32)                  # (NH, T, DH)

    # BertSelfOutput.dense as per-head matmul + leading-axis sum (no lane concat),
    # then residual + LayerNorm (dropout = identity in eval mode).
    proj_h = jnp.einsum('hqd,hdo->hqo', ctx, wo_ref[...],
                        preferred_element_type=jnp.float32)               # (NH, T, H)
    proj = jnp.sum(proj_h, axis=0) + bo_ref[...]
    attn_out = _layernorm(proj + x, g1_ref[...], be1_ref[...])

    # -- BertIntermediate (dense + exact gelu) + BertOutput (dense + res + LN) --
    inter = jnp.dot(attn_out, w1_ref[...], preferred_element_type=jnp.float32) + b1_ref[...]
    inter = inter * 0.5 * (1.0 + jax.lax.erf(inter * (1.0 / math.sqrt(2.0))))
    proj2 = jnp.dot(inter, w2_ref[...], preferred_element_type=jnp.float32) + b2_ref[...]
    out_ref[...] = _layernorm(proj2 + attn_out, g2_ref[...], be2_ref[...])


# ---- wrapper ----------------------------------------------------------------
_VMEM_SPEC = pl.BlockSpec(memory_space=pltpu.MemorySpace.VMEM)


def bert_layer(hidden_states, attention_mask, params):
    # Flatten tokens; build block-diagonal (T, T) mask so flattened attention
    # stays within each batch item and respects the per-token attention mask.
    x = hidden_states.reshape(T, H)
    m = attention_mask.reshape(T).astype(jnp.float32)
    bid = jnp.arange(T, dtype=jnp.int32) // S
    same_batch = (bid[:, None] == bid[None, :]).astype(jnp.float32)
    m2 = same_batch * m[:, None] * m[None, :]                 # (T, T)

    # wo rows are ordered [h0 d0..d7, h1 ...] (matches ctx head concat order),
    # so this reshape is exact.
    wo_h = params["wo"].reshape(NH, DH, H)

    out = pl.pallas_call(
        bert_layer_kernel,
        out_shape=jax.ShapeDtypeStruct((T, H), jnp.float32),
        in_specs=[_VMEM_SPEC] * 15,
        out_specs=_VMEM_SPEC,
    )(x, m2,
      params["wqkv"], params["q_bias"], params["v_bias"],
      wo_h, params["bo"], params["ln1_g"], params["ln1_b"],
      params["w1"], params["b1"], params["w2"], params["b2"],
      params["ln2_g"], params["ln2_b"])

    return out.reshape(B, S, H)


def init_params(key):
    ks = jax.random.split(key, 8)
    std = 0.02
    return {
        # DisentangledSelfAttention: in_proj (no bias, columns [Q|K|V]) + q/v bias
        "wqkv":   std * jax.random.normal(ks[0], (H, 3 * H), jnp.float32),
        "q_bias": std * jax.random.normal(ks[1], (1, H), jnp.float32),
        "v_bias": std * jax.random.normal(ks[2], (1, H), jnp.float32),
        # BertSelfOutput.dense + LayerNorm
        "wo":     std * jax.random.normal(ks[3], (H, H), jnp.float32),
        "bo":     jnp.zeros((1, H), jnp.float32),
        "ln1_g":  jnp.ones((1, H), jnp.float32),
        "ln1_b":  jnp.zeros((1, H), jnp.float32),
        # BertIntermediate.dense
        "w1":     std * jax.random.normal(ks[4], (H, INTER), jnp.float32),
        "b1":     std * jax.random.normal(ks[5], (1, INTER), jnp.float32),
        # BertOutput.dense + LayerNorm
        "w2":     std * jax.random.normal(ks[6], (INTER, H), jnp.float32),
        "b2":     std * jax.random.normal(ks[7], (1, H), jnp.float32),
        "ln2_g":  jnp.ones((1, H), jnp.float32),
        "ln2_b":  jnp.zeros((1, H), jnp.float32),
    }


if __name__ == "__main__":
    key = jax.random.PRNGKey(0)
    k_x, k_p = jax.random.split(key)
    hidden_states = jax.random.normal(k_x, (B, S, H), jnp.float32)
    attention_mask = jnp.ones((B, S), jnp.float32)   # all tokens valid
    params = init_params(k_p)

    out = jax.block_until_ready(bert_layer(hidden_states, attention_mask, params))
    assert out.shape == (B, S, H) and out.dtype == jnp.float32
    assert bool(jnp.all(jnp.isfinite(out)))
    # TODO(synk): StableDropout (hidden/attention dropout) is treated as eval-mode identity.
    print("KERNEL_OK")
</pallas_src>

<mosaic_0001>
module attributes {stable_mosaic.version = 11 : i64} {
  func.func @bert_layer_kernel(%arg0: memref<16x32xf32, #tpu.memory_space<vmem>>, %arg1: memref<16x16xf32, #tpu.memory_space<vmem>>, %arg2: memref<32x96xf32, #tpu.memory_space<vmem>>, %arg3: memref<1x32xf32, #tpu.memory_space<vmem>>, %arg4: memref<1x32xf32, #tpu.memory_space<vmem>>, %arg5: memref<4x8x32xf32, #tpu.memory_space<vmem>>, %arg6: memref<1x32xf32, #tpu.memory_space<vmem>>, %arg7: memref<1x32xf32, #tpu.memory_space<vmem>>, %arg8: memref<1x32xf32, #tpu.memory_space<vmem>>, %arg9: memref<32x64xf32, #tpu.memory_space<vmem>>, %arg10: memref<1x64xf32, #tpu.memory_space<vmem>>, %arg11: memref<64x32xf32, #tpu.memory_space<vmem>>, %arg12: memref<1x32xf32, #tpu.memory_space<vmem>>, %arg13: memref<1x32xf32, #tpu.memory_space<vmem>>, %arg14: memref<1x32xf32, #tpu.memory_space<vmem>>, %arg15: memref<16x32xf32, #tpu.memory_space<vmem>>) attributes {dimension_semantics = [], scalar_prefetch = 0 : i64, scratch_operands = 0 : i64, tpu.core_type = #tpu.core_type<tc>} {
    %c0 = arith.constant 0 : index
    %c0_0 = arith.constant 0 : index
    %0 = vector.load %arg0[%c0, %c0_0] : memref<16x32xf32, #tpu.memory_space<vmem>>, vector<16x32xf32>
    %c0_1 = arith.constant 0 : index
    %c0_2 = arith.constant 0 : index
    %1 = vector.load %arg1[%c0_1, %c0_2] : memref<16x16xf32, #tpu.memory_space<vmem>>, vector<16x16xf32>
    %cst = arith.constant 0.000000e+00 : f32
    %2 = vector.broadcast %cst : f32 to vector<16x16xf32>
    %3 = arith.cmpf ogt, %1, %2 : vector<16x16xf32>
    %c0_3 = arith.constant 0 : index
    %c0_4 = arith.constant 0 : index
    %4 = vector.load %arg2[%c0_3, %c0_4] : memref<32x96xf32, #tpu.memory_space<vmem>>, vector<32x96xf32>
    %cst_5 = arith.constant dense<0.000000e+00> : vector<16x96xf32>
    %5 = tpu.matmul %0, %4, %cst_5 {dimension_numbers = #tpu.dot_dimension_numbers<[1], [0], [0], [1], [0, 0, 1, 1], [], []>} : vector<16x32xf32>, vector<32x96xf32>, vector<16x96xf32> -> vector<16x96xf32>
    %6 = vector.extract_strided_slice %5 {offsets = [0, 0], sizes = [16, 32], strides = [1, 1]} : vector<16x96xf32> to vector<16x32xf32>
    %c0_6 = arith.constant 0 : index
    %c0_7 = arith.constant 0 : index
    %7 = vector.load %arg3[%c0_6, %c0_7] : memref<1x32xf32, #tpu.memory_space<vmem>>, vector<1x32xf32>
    %8 = vector.broadcast %7 : vector<1x32xf32> to vector<16x32xf32>
    %9 = arith.addf %6, %8 : vector<16x32xf32>
    %10 = vector.extract_strided_slice %5 {offsets = [0, 32], sizes = [16, 32], strides = [1, 1]} : vector<16x96xf32> to vector<16x32xf32>
    %11 = vector.extract_strided_slice %5 {offsets = [0, 64], sizes = [16, 32], strides = [1, 1]} : vector<16x96xf32> to vector<16x32xf32>
    %c0_8 = arith.constant 0 : index
    %c0_9 = arith.constant 0 : index
    %12 = vector.load %arg4[%c0_8, %c0_9] : memref<1x32xf32, #tpu.memory_space<vmem>>, vector<1x32xf32>
    %13 = vector.broadcast %12 : vector<1x32xf32> to vector<16x32xf32>
    %14 = arith.addf %11, %13 : vector<16x32xf32>
    %15 = vector.extract_strided_slice %9 {offsets = [0, 0], sizes = [16, 8], strides = [1, 1]} : vector<16x32xf32> to vector<16x8xf32>
    %16 = vector.extract_strided_slice %9 {offsets = [0, 8], sizes = [16, 8], strides = [1, 1]} : vector<16x32xf32> to vector<16x8xf32>
    %17 = vector.extract_strided_slice %9 {offsets = [0, 16], sizes = [16, 8], strides = [1, 1]} : vector<16x32xf32> to vector<16x8xf32>
    %18 = vector.extract_strided_slice %9 {offsets = [0, 24], sizes = [16, 8], strides = [1, 1]} : vector<16x32xf32> to vector<16x8xf32>
    %19 = vector.shape_cast %15 : vector<16x8xf32> to vector<1x16x8xf32>
    %20 = vector.shape_cast %16 : vector<16x8xf32> to vector<1x16x8xf32>
    %21 = vector.shape_cast %17 : vector<16x8xf32> to vector<1x16x8xf32>
    %22 = vector.shape_cast %18 : vector<16x8xf32> to vector<1x16x8xf32>
    %23 = tpu.concatenate %19, %20, %21, %22 in 0 : vector<1x16x8xf32>, vector<1x16x8xf32>, vector<1x16x8xf32>, vector<1x16x8xf32> -> vector<4x16x8xf32>
    %24 = vector.extract_strided_slice %10 {offsets = [0, 0], sizes = [16, 8], strides = [1, 1]} : vector<16x32xf32> to vector<16x8xf32>
    %25 = vector.extract_strided_slice %10 {offsets = [0, 8], sizes = [16, 8], strides = [1, 1]} : vector<16x32xf32> to vector<16x8xf32>
    %26 = vector.extract_strided_slice %10 {offsets = [0, 16], sizes = [16, 8], strides = [1, 1]} : vector<16x32xf32> to vector<16x8xf32>
    %27 = vector.extract_strided_slice %10 {offsets = [0, 24], sizes = [16, 8], strides = [1, 1]} : vector<16x32xf32> to vector<16x8xf32>
    %28 = vector.shape_cast %24 : vector<16x8xf32> to vector<1x16x8xf32>
    %29 = vector.shape_cast %25 : vector<16x8xf32> to vector<1x16x8xf32>
    %30 = vector.shape_cast %26 : vector<16x8xf32> to vector<1x16x8xf32>
    %31 = vector.shape_cast %27 : vector<16x8xf32> to vector<1x16x8xf32>
    %32 = tpu.concatenate %28, %29, %30, %31 in 0 : vector<1x16x8xf32>, vector<1x16x8xf32>, vector<1x16x8xf32>, vector<1x16x8xf32> -> vector<4x16x8xf32>
    %33 = vector.extract_strided_slice %14 {offsets = [0, 0], sizes = [16, 8], strides = [1, 1]} : vector<16x32xf32> to vector<16x8xf32>
    %34 = vector.extract_strided_slice %14 {offsets = [0, 8], sizes = [16, 8], strides = [1, 1]} : vector<16x32xf32> to vector<16x8xf32>
    %35 = vector.extract_strided_slice %14 {offsets = [0, 16], sizes = [16, 8], strides = [1, 1]} : vector<16x32xf32> to vector<16x8xf32>
    %36 = vector.extract_strided_slice %14 {offsets = [0, 24], sizes = [16, 8], strides = [1, 1]} : vector<16x32xf32> to vector<16x8xf32>
    %37 = vector.shape_cast %33 : vector<16x8xf32> to vector<1x16x8xf32>
    %38 = vector.shape_cast %34 : vector<16x8xf32> to vector<1x16x8xf32>
    %39 = vector.shape_cast %35 : vector<16x8xf32> to vector<1x16x8xf32>
    %40 = vector.shape_cast %36 : vector<16x8xf32> to vector<1x16x8xf32>
    %41 = tpu.concatenate %37, %38, %39, %40 in 0 : vector<1x16x8xf32>, vector<1x16x8xf32>, vector<1x16x8xf32>, vector<1x16x8xf32> -> vector<4x16x8xf32>
    "tpu.trace_start"() <{level = 10 : i32, message = "hqd,hkd->hqk"}> : () -> ()
    %cst_10 = arith.constant dense<0.000000e+00> : vector<4x16x16xf32>
    %42 = tpu.matmul %23, %32, %cst_10 {dimension_numbers = #tpu.dot_dimension_numbers<[2], [2], [1], [1], [0, 0, 0, 1, 1, 1], [0], [0]>} : vector<4x16x8xf32>, vector<4x16x8xf32>, vector<4x16x16xf32> -> vector<4x16x16xf32>
    "tpu.trace_stop"() : () -> ()
    %cst_11 = arith.constant 0.353553385 : f32
    %43 = vector.broadcast %cst_11 : f32 to vector<4x16x16xf32>
    %44 = arith.mulf %42, %43 : vector<4x16x16xf32>
    %45 = vector.shape_cast %3 : vector<16x16xi1> to vector<1x16x16xi1>
    %cst_12 = arith.constant -3.40282347E+38 : f32
    %46 = vector.shape_cast %45 : vector<1x16x16xi1> to vector<1x16x16xi1>
    %47 = vector.broadcast %46 : vector<1x16x16xi1> to vector<4x16x16xi1>
    %48 = vector.broadcast %cst_12 : f32 to vector<4x16x16xf32>
    %49 = arith.select %47, %44, %48 : vector<4x16x16xi1>, vector<4x16x16xf32>
    %cst_13 = arith.constant dense<0xFF800000> : vector<4x16xf32>
    %50 = vector.multi_reduction <maximumf>, %49, %cst_13 [2] : vector<4x16x16xf32> to vector<4x16xf32>
    %51 = vector.shape_cast %50 : vector<4x16xf32> to vector<4x16x1xf32>
    %52 = vector.broadcast %51 : vector<4x16x1xf32> to vector<4x16x16xf32>
    %53 = arith.subf %49, %52 : vector<4x16x16xf32>
    %54 = math.exp %53 : vector<4x16x16xf32>
    %cst_14 = arith.constant dense<0.000000e+00> : vector<4x16xf32>
    %55 = vector.multi_reduction <add>, %54, %cst_14 [2] : vector<4x16x16xf32> to vector<4x16xf32>
    %56 = vector.shape_cast %55 : vector<4x16xf32> to vector<4x16x1xf32>
    %57 = vector.broadcast %56 : vector<4x16x1xf32> to vector<4x16x16xf32>
    %58 = arith.divf %54, %57 : vector<4x16x16xf32>
    %cst_15 = arith.constant 0.000000e+00 : f32
    %59 = vector.shape_cast %45 : vector<1x16x16xi1> to vector<1x16x16xi1>
    %60 = vector.broadcast %59 : vector<1x16x16xi1> to vector<4x16x16xi1>
    %61 = vector.broadcast %cst_15 : f32 to vector<4x16x16xf32>
    %62 = arith.select %60, %58, %61 : vector<4x16x16xi1>, vector<4x16x16xf32>
    "tpu.trace_start"() <{level = 10 : i32, message = "hqk,hkd->hqd"}> : () -> ()
    %cst_16 = arith.constant dense<0.000000e+00> : vector<4x16x8xf32>
    %63 = tpu.matmul %62, %41, %cst_16 {dimension_numbers = #tpu.dot_dimension_numbers<[2], [1], [1], [2], [0, 0, 0, 1, 1, 2], [0], [0]>} : vector<4x16x16xf32>, vector<4x16x8xf32>, vector<4x16x8xf32> -> vector<4x16x8xf32>
    "tpu.trace_stop"() : () -> ()
    %c0_17 = arith.constant 0 : index
    %c0_18 = arith.constant 0 : index
    %c0_19 = arith.constant 0 : index
    %64 = vector.load %arg5[%c0_17, %c0_18, %c0_19] : memref<4x8x32xf32, #tpu.memory_space<vmem>>, vector<4x8x32xf32>
    "tpu.trace_start"() <{level = 10 : i32, message = "hqd,hdo->hqo"}> : () -> ()
    %cst_20 = arith.constant dense<0.000000e+00> : vector<4x16x32xf32>
    %65 = tpu.matmul %63, %64, %cst_20 {dimension_numbers = #tpu.dot_dimension_numbers<[2], [1], [1], [2], [0, 0, 0, 1, 1, 2], [0], [0]>} : vector<4x16x8xf32>, vector<4x8x32xf32>, vector<4x16x32xf32> -> vector<4x16x32xf32>
    "tpu.trace_stop"() : () -> ()
    %cst_21 = arith.constant dense<0.000000e+00> : vector<16x32xf32>
    %66 = vector.multi_reduction <add>, %65, %cst_21 [0] : vector<4x16x32xf32> to vector<16x32xf32>
    %c0_22 = arith.constant 0 : index
    %c0_23 = arith.constant 0 : index
    %67 = vector.load %arg6[%c0_22, %c0_23] : memref<1x32xf32, #tpu.memory_space<vmem>>, vector<1x32xf32>
    %68 = vector.broadcast %67 : vector<1x32xf32> to vector<16x32xf32>
    %69 = arith.addf %66, %68 : vector<16x32xf32>
    %70 = arith.addf %69, %0 : vector<16x32xf32>
    %c0_24 = arith.constant 0 : index
    %c0_25 = arith.constant 0 : index
    %71 = vector.load %arg7[%c0_24, %c0_25] : memref<1x32xf32, #tpu.memory_space<vmem>>, vector<1x32xf32>
    %c0_26 = arith.constant 0 : index
    %c0_27 = arith.constant 0 : index
    %72 = vector.load %arg8[%c0_26, %c0_27] : memref<1x32xf32, #tpu.memory_space<vmem>>, vector<1x32xf32>
    %cst_28 = arith.constant dense<0.000000e+00> : vector<16xf32>
    %73 = vector.multi_reduction <add>, %70, %cst_28 [1] : vector<16x32xf32> to vector<16xf32>
    %74 = vector.shape_cast %73 : vector<16xf32> to vector<16x1xf32>
    %cst_29 = arith.constant 3.200000e+01 : f32
    %75 = vector.broadcast %cst_29 : f32 to vector<16x1xf32>
    %76 = arith.divf %74, %75 : vector<16x1xf32>
    %77 = vector.broadcast %76 : vector<16x1xf32> to vector<16x32xf32>
    %78 = arith.subf %70, %77 : vector<16x32xf32>
    %79 = arith.mulf %78, %78 : vector<16x32xf32>
    %cst_30 = arith.constant dense<0.000000e+00> : vector<16xf32>
    %80 = vector.multi_reduction <add>, %79, %cst_30 [1] : vector<16x32xf32> to vector<16xf32>
    %81 = vector.shape_cast %80 : vector<16xf32> to vector<16x1xf32>
    %cst_31 = arith.constant 3.200000e+01 : f32
    %82 = vector.broadcast %cst_31 : f32 to vector<16x1xf32>
    %83 = arith.divf %81, %82 : vector<16x1xf32>
    %84 = vector.broadcast %76 : vector<16x1xf32> to vector<16x32xf32>
    %85 = arith.subf %70, %84 : vector<16x32xf32>
    %cst_32 = arith.constant 1.000000e-07 : f32
    %86 = vector.broadcast %cst_32 : f32 to vector<16x1xf32>
    %87 = arith.addf %83, %86 : vector<16x1xf32>
    %88 = math.rsqrt %87 : vector<16x1xf32>
    %89 = vector.broadcast %88 : vector<16x1xf32> to vector<16x32xf32>
    %90 = arith.mulf %85, %89 : vector<16x32xf32>
    %91 = vector.broadcast %71 : vector<1x32xf32> to vector<16x32xf32>
    %92 = arith.mulf %90, %91 : vector<16x32xf32>
    %93 = vector.broadcast %72 : vector<1x32xf32> to vector<16x32xf32>
    %94 = arith.addf %92, %93 : vector<16x32xf32>
    %c0_33 = arith.constant 0 : index
    %c0_34 = arith.constant 0 : index
    %95 = vector.load %arg9[%c0_33, %c0_34] : memref<32x64xf32, #tpu.memory_space<vmem>>, vector<32x64xf32>
    %cst_35 = arith.constant dense<0.000000e+00> : vector<16x64xf32>
    %96 = tpu.matmul %94, %95, %cst_35 {dimension_numbers = #tpu.dot_dimension_numbers<[1], [0], [0], [1], [0, 0, 1, 1], [], []>} : vector<16x32xf32>, vector<32x64xf32>, vector<16x64xf32> -> vector<16x64xf32>
    %c0_36 = arith.constant 0 : index
    %c0_37 = arith.constant 0 : index
    %97 = vector.load %arg10[%c0_36, %c0_37] : memref<1x64xf32, #tpu.memory_space<vmem>>, vector<1x64xf32>
    %98 = vector.broadcast %97 : vector<1x64xf32> to vector<16x64xf32>
    %99 = arith.addf %96, %98 : vector<16x64xf32>
    %cst_38 = arith.constant 5.000000e-01 : f32
    %100 = vector.broadcast %cst_38 : f32 to vector<16x64xf32>
    %101 = arith.mulf %99, %100 : vector<16x64xf32>
    %cst_39 = arith.constant 0.707106769 : f32
    %102 = vector.broadcast %cst_39 : f32 to vector<16x64xf32>
    %103 = arith.mulf %99, %102 : vector<16x64xf32>
    %104 = math.erf %103 : vector<16x64xf32>
    %cst_40 = arith.constant 1.000000e+00 : f32
    %105 = vector.broadcast %cst_40 : f32 to vector<16x64xf32>
    %106 = arith.addf %105, %104 : vector<16x64xf32>
    %107 = arith.mulf %101, %106 : vector<16x64xf32>
    %c0_41 = arith.constant 0 : index
    %c0_42 = arith.constant 0 : index
    %108 = vector.load %arg11[%c0_41, %c0_42] : memref<64x32xf32, #tpu.memory_space<vmem>>, vector<64x32xf32>
    %cst_43 = arith.constant dense<0.000000e+00> : vector<16x32xf32>
    %109 = tpu.matmul %107, %108, %cst_43 {dimension_numbers = #tpu.dot_dimension_numbers<[1], [0], [0], [1], [0, 0, 1, 1], [], []>} : vector<16x64xf32>, vector<64x32xf32>, vector<16x32xf32> -> vector<16x32xf32>
    %c0_44 = arith.constant 0 : index
    %c0_45 = arith.constant 0 : index
    %110 = vector.load %arg12[%c0_44, %c0_45] : memref<1x32xf32, #tpu.memory_space<vmem>>, vector<1x32xf32>
    %111 = vector.broadcast %110 : vector<1x32xf32> to vector<16x32xf32>
    %112 = arith.addf %109, %111 : vector<16x32xf32>
    %113 = arith.addf %112, %94 : vector<16x32xf32>
    %c0_46 = arith.constant 0 : index
    %c0_47 = arith.constant 0 : index
    %114 = vector.load %arg13[%c0_46, %c0_47] : memref<1x32xf32, #tpu.memory_space<vmem>>, vector<1x32xf32>
    %c0_48 = arith.constant 0 : index
    %c0_49 = arith.constant 0 : index
    %115 = vector.load %arg14[%c0_48, %c0_49] : memref<1x32xf32, #tpu.memory_space<vmem>>, vector<1x32xf32>
    %cst_50 = arith.constant dense<0.000000e+00> : vector<16xf32>
    %116 = vector.multi_reduction <add>, %113, %cst_50 [1] : vector<16x32xf32> to vector<16xf32>
    %117 = vector.shape_cast %116 : vector<16xf32> to vector<16x1xf32>
    %cst_51 = arith.constant 3.200000e+01 : f32
    %118 = vector.broadcast %cst_51 : f32 to vector<16x1xf32>
    %119 = arith.divf %117, %118 : vector<16x1xf32>
    %120 = vector.broadcast %119 : vector<16x1xf32> to vector<16x32xf32>
    %121 = arith.subf %113, %120 : vector<16x32xf32>
    %122 = arith.mulf %121, %121 : vector<16x32xf32>
    %cst_52 = arith.constant dense<0.000000e+00> : vector<16xf32>
    %123 = vector.multi_reduction <add>, %122, %cst_52 [1] : vector<16x32xf32> to vector<16xf32>
    %124 = vector.shape_cast %123 : vector<16xf32> to vector<16x1xf32>
    %cst_53 = arith.constant 3.200000e+01 : f32
    %125 = vector.broadcast %cst_53 : f32 to vector<16x1xf32>
    %126 = arith.divf %124, %125 : vector<16x1xf32>
    %127 = vector.broadcast %119 : vector<16x1xf32> to vector<16x32xf32>
    %128 = arith.subf %113, %127 : vector<16x32xf32>
    %cst_54 = arith.constant 1.000000e-07 : f32
    %129 = vector.broadcast %cst_54 : f32 to vector<16x1xf32>
    %130 = arith.addf %126, %129 : vector<16x1xf32>
    %131 = math.rsqrt %130 : vector<16x1xf32>
    %132 = vector.broadcast %131 : vector<16x1xf32> to vector<16x32xf32>
    %133 = arith.mulf %128, %132 : vector<16x32xf32>
    %134 = vector.broadcast %114 : vector<1x32xf32> to vector<16x32xf32>
    %135 = arith.mulf %133, %134 : vector<16x32xf32>
    %136 = vector.broadcast %115 : vector<1x32xf32> to vector<16x32xf32>
    %137 = arith.addf %135, %136 : vector<16x32xf32>
    %c0_55 = arith.constant 0 : index
    %c0_56 = arith.constant 0 : index
    %138 = vector.load %arg15[%c0_55, %c0_56] : memref<16x32xf32, #tpu.memory_space<vmem>>, vector<16x32xf32>
    tpu.vector_store %arg15[%c0_55, %c0_56], %137 {strides = array<i32>} : memref<16x32xf32, #tpu.memory_space<vmem>>, vector<16x32xf32>,
    return
  }
}

</mosaic_0001>

<llo_original>
// kernel: tpu_custom_call.1
$region0: #{tpu_custom_call.1}
  #allocation0 [shape = 'u32[]', space=smem, size = 0x4, offset = 0x4, fixed_abs, tag = 'smem constant byte address 0x4 - core index']
  #allocation1 [shape = 'u32[144,128]{1,0:T(1,128)}', space=vmem, size = 0x12000, scoped, tag = 'internal scratch']
  %s0 = inlined_call_operand.hbm [shape: f32[16,32], index: 0, kind: input, shape index: {}]
  %s1 = inlined_call_operand.hbm [shape: f32[16,16], index: 1, kind: input, shape index: {}]
  %s2 = inlined_call_operand.vmem [shape: f32[32,96], index: 2, kind: input, shape index: {}]
  %s3 = inlined_call_operand.vmem [shape: f32[1,32], index: 3, kind: input, shape index: {}]
  %s4 = inlined_call_operand.vmem [shape: f32[1,32], index: 4, kind: input, shape index: {}]
  %s5 = inlined_call_operand.vmem [shape: f32[4,8,32], index: 5, kind: input, shape index: {}]
  %s6 = inlined_call_operand.vmem [shape: f32[1,32], index: 6, kind: input, shape index: {}]
  %s7 = inlined_call_operand.vmem [shape: f32[1,32], index: 7, kind: input, shape index: {}]
  %s8 = inlined_call_operand.vmem [shape: f32[1,32], index: 8, kind: input, shape index: {}]
  %s9 = inlined_call_operand.vmem [shape: f32[32,64], index: 9, kind: input, shape index: {}]
  %s10 = inlined_call_operand.vmem [shape: f32[1,64], index: 10, kind: input, shape index: {}]
  %s11 = inlined_call_operand.vmem [shape: f32[64,32], index: 11, kind: input, shape index: {}]
  %s12 = inlined_call_operand.vmem [shape: f32[1,32], index: 12, kind: input, shape index: {}]
  %s13 = inlined_call_operand.vmem [shape: f32[1,32], index: 13, kind: input, shape index: {}]
  %s14 = inlined_call_operand.vmem [shape: f32[1,32], index: 14, kind: input, shape index: {}]
  %s15 = inlined_call_operand.hbm [shape: f32[16,32], index: 15, kind: output, shape index: {}]
  %s16 = sld [smem:[#allocation0]]
  $region78: #{tpu_custom_call.1} parent=0
    _
  %s18 = ssub.s32 1, %s16
  %s19 = scalar_select 0, %s18, %s16
  $region1: #{tpu_custom_call.1} parent=0
    #allocation2 [shape = 'u8[8192]{0}', space=vmem, size = 0x2000, scoped, tag = 'input window, operand 0, single buffered']
    #allocation3 [shape = 's32[1]{0}', space=sflag, size = 0x4, scoped, tag = 'scoped memory for tpu_custom_call.1']
    #allocation4 [shape = 's32[1]{0}', space=sflag, size = 0x4, scoped, tag = 'scoped memory for tpu_custom_call.1']
    #allocation5 [shape = 'u8[8192]{0}', space=vmem, size = 0x2000, scoped, tag = 'input window, operand 1, single buffered']
    #allocation6 [shape = 's32[1]{0}', space=sflag, size = 0x4, scoped, tag = 'scoped memory for tpu_custom_call.1']
    #allocation7 [shape = 'u8[8192]{0}', space=vmem, size = 0x2000, scoped, tag = 'output window, operand 0, single buffered']
    %20 = vsyncpa [#allocation3], 0
    %21 = vsyncpa [#allocation6], 0
    %22 = vsyncpa [#allocation4], 0
    // Predicated region
    $region2: #{tpu_custom_call.1} parent=1 // pred_check
      _
    $region3: #{tpu_custom_call.1} parent=1 // pred_check_branch
      %24 = sbr.rel (0) target = $region5
    $region4: #{tpu_custom_call.1} parent=1 // pred_region
      %s26 = ssub.s32 256, 256
      %27 = vsyncadd [#allocation3], %s26
      %s28 = sshll.u32 [#allocation2], 4
      %s29 = int_to_ptr.vmem [resolvable:$true] %s28
      %34 = dma.hbm_to_vmem [thread:$0]  %s0, 256, %s29, [#allocation3], 128, 128, 8
    $region5: #{tpu_custom_call.1} parent=1 // pred_fallthru
      _
    // Predicated region
    $region6: #{tpu_custom_call.1} parent=1 // pred_check
      _
    $region7: #{tpu_custom_call.1} parent=1 // pred_check_branch
      %36 = sbr.rel (0) target = $region9
    $region8: #{tpu_custom_call.1} parent=1 // pred_region
      %s38 = ssub.s32 256, 256
      %39 = vsyncadd [#allocation6], %s38
      %s40 = sshll.u32 [#allocation5], 4
      %s41 = int_to_ptr.vmem [resolvable:$true] %s40
      %46 = dma.hbm_to_vmem [thread:$0]  %s1, 256, %s41, [#allocation6], 128, 128, 8
    $region9: #{tpu_custom_call.1} parent=1 // pred_fallthru
      _
    // Predicated region
    $region10: #{tpu_custom_call.1} parent=1 // pred_check
      _
    $region11: #{tpu_custom_call.1} parent=1 // pred_check_branch
      %48 = sbr.rel (0) target = $region13
    $region12: #{tpu_custom_call.1} parent=1 // pred_region
      _
    $region13: #{tpu_custom_call.1} parent=1 // pred_fallthru
      _
    // Predicated region
    $region14: #{tpu_custom_call.1} parent=1 // pred_check
      _
    $region15: #{tpu_custom_call.1} parent=1 // pred_check_branch
      %50 = sbr.rel (0) target = $region17
    $region16: #{tpu_custom_call.1} parent=1 // pred_region
      _
    $region17: #{tpu_custom_call.1} parent=1 // pred_fallthru
      _
    // Predicated region
    $region18: #{tpu_custom_call.1} parent=1 // pred_check
      _
    $region19: #{tpu_custom_call.1} parent=1 // pred_check_branch
      %52 = sbr.rel (0) target = $region21
    $region20: #{tpu_custom_call.1} parent=1 // pred_region
      _
    $region21: #{tpu_custom_call.1} parent=1 // pred_fallthru
      _
    // Predicated region
    $region22: #{tpu_custom_call.1} parent=1 // pred_check
      _
    $region23: #{tpu_custom_call.1} parent=1 // pred_check_branch
      %54 = sbr.rel (0) target = $region25
    $region24: #{tpu_custom_call.1} parent=1 // pred_region
      _
    $region25: #{tpu_custom_call.1} parent=1 // pred_fallthru
      _
    // Predicated region
    $region26: #{tpu_custom_call.1} parent=1 // pred_check
      _
    $region27: #{tpu_custom_call.1} parent=1 // pred_check_branch
      %56 = sbr.rel (0) target = $region29
    $region28: #{tpu_custom_call.1} parent=1 // pred_region
      _
    $region29: #{tpu_custom_call.1} parent=1 // pred_fallthru
      _
    // Predicated region
    $region30: #{tpu_custom_call.1} parent=1 // pred_check
      _
    $region31: #{tpu_custom_call.1} parent=1 // pred_check_branch
      %58 = sbr.rel (0) target = $region33
    $region32: #{tpu_custom_call.1} parent=1 // pred_region
      _
    $region33: #{tpu_custom_call.1} parent=1 // pred_fallthru
      _
    // Predicated region
    $region34: #{tpu_custom_call.1} parent=1 // pred_check
      _
    $region35: #{tpu_custom_call.1} parent=1 // pred_check_branch
      %60 = sbr.rel (0) target = $region37
    $region36: #{tpu_custom_call.1} parent=1 // pred_region
      _
    $region37: #{tpu_custom_call.1} parent=1 // pred_fallthru
      _
    // Predicated region
    $region38: #{tpu_custom_call.1} parent=1 // pred_check
      _
    $region39: #{tpu_custom_call.1} parent=1 // pred_check_branch
      %62 = sbr.rel (0) target = $region41
    $region40: #{tpu_custom_call.1} parent=1 // pred_region
      _
    $region41: #{tpu_custom_call.1} parent=1 // pred_fallthru
      _
    // Predicated region
    $region42: #{tpu_custom_call.1} parent=1 // pred_check
      _
    $region43: #{tpu_custom_call.1} parent=1 // pred_check_branch
      %64 = sbr.rel (0) target = $region45
    $region44: #{tpu_custom_call.1} parent=1 // pred_region
      _
    $region45: #{tpu_custom_call.1} parent=1 // pred_fallthru
      _
    // Predicated region
    $region46: #{tpu_custom_call.1} parent=1 // pred_check
      _
    $region47: #{tpu_custom_call.1} parent=1 // pred_check_branch
      %66 = sbr.rel (0) target = $region49
    $region48: #{tpu_custom_call.1} parent=1 // pred_region
      _
    $region49: #{tpu_custom_call.1} parent=1 // pred_fallthru
      _
    // Predicated region
    $region50: #{tpu_custom_call.1} parent=1 // pred_check
      _
    $region51: #{tpu_custom_call.1} parent=1 // pred_check_branch
      %68 = sbr.rel (0) target = $region53
    $region52: #{tpu_custom_call.1} parent=1 // pred_region
      _
    $region53: #{tpu_custom_call.1} parent=1 // pred_fallthru
      _
    // Predicated region
    $region54: #{tpu_custom_call.1} parent=1 // pred_check
      _
    $region55: #{tpu_custom_call.1} parent=1 // pred_check_branch
      %70 = sbr.rel (0) target = $region57
    $region56: #{tpu_custom_call.1} parent=1 // pred_region
      _
    $region57: #{tpu_custom_call.1} parent=1 // pred_fallthru
      _
    // Predicated region
    $region58: #{tpu_custom_call.1} parent=1 // pred_check
      _
    $region59: #{tpu_custom_call.1} parent=1 // pred_check_branch
      %72 = sbr.rel (0) target = $region61
    $region60: #{tpu_custom_call.1} parent=1 // pred_region
      _
    $region61: #{tpu_custom_call.1} parent=1 // pred_fallthru
      _
    // Predicated region
    $region62: #{tpu_custom_call.1} parent=1 // pred_check
      _
    $region63: #{tpu_custom_call.1} parent=1 // pred_check_branch
      %74 = sbr.rel (0) target = $region65
    $region64: #{tpu_custom_call.1} parent=1 // pred_region
      %75 = dma.done [#allocation3], 256
    $region65: #{tpu_custom_call.1} parent=1 // pred_fallthru
      _
    // Predicated region
    $region66: #{tpu_custom_call.1} parent=1 // pred_check
      _
    $region67: #{tpu_custom_call.1} parent=1 // pred_check_branch
      %77 = sbr.rel (0) target = $region69
    $region68: #{tpu_custom_call.1} parent=1 // pred_region
      %78 = dma.done [#allocation6], 256
    $region69: #{tpu_custom_call.1} parent=1 // pred_fallthru
      _
    %v79 = vld [vmem:[#allocation2] sm:$0xff]
    %v80 = vld [vmem:[#allocation2 + $0x8] sm:$0xff]
    %v81 = vld [vmem:[#allocation5] sm:$0xff]
    %v82 = vld [vmem:[#allocation5 + $0x8] sm:$0xff]
    %vm83 = vcmp.gt.f32.partialorder %v81, 0.0
    %vm84 = vcmp.gt.f32.partialorder %v82, 0.0
    %v85 = vld [vmem:[%s2] sm:$0xff]
    %v86 = vld [vmem:[%s2 + $0x8] sm:$0xff]
    %v87 = vld [vmem:[%s2 + $0x10] sm:$0xff]
    %v88 = vld [vmem:[%s2 + $0x18] sm:$0xff]
    %vm89 = vcmask 261120
    %v91 = vsel %vm89, %v79, 0
    %v94 = vsel %vm89, %v80, 0
    %96 = vmatprep.subr.mxu0 0.0
    %97 = vmatpush1.msra.mxu0 %v85
    %98 = vmatprep.subr.mxu0 0.0
    %99 = vmatpush1.msra.mxu0 %v86
    %100 = vmatprep.subr.mxu0 0.0
    %101 = vmatpush1.msra.mxu0 %v87
    %102 = vmatprep.subr.mxu0 0.0
    %103 = vmatpush1.msra.mxu0 %v88
    %104 = vmatprep.subr.mxu0 0.0
    %105 = vmatpush1.msra.mxu0 0.0
    %106 = vmatprep.subr.mxu0 0.0
    %107 = vmatpush1.msra.mxu0 0.0
    %108 = vmatprep.subr.mxu0 0.0
    %109 = vmatpush1.msra.mxu0 0.0
    %110 = vmatprep.subr.mxu0 0.0
    %111 = vmatpush1.msra.mxu0 0.0
    %112 = vmatprep.subr.mxu0 0.0
    %113 = vmatpush1.msra.mxu0 0.0
    %114 = vmatprep.subr.mxu0 0.0
    %115 = vmatpush1.msra.mxu0 0.0
    %116 = vmatprep.subr.mxu0 0.0
    %117 = vmatpush1.msra.mxu0 0.0
    %118 = vmatprep.subr.mxu0 0.0
    %119 = vmatpush1.msra.mxu0 0.0
    %120 = vmatprep.subr.mxu0 0.0
    %121 = vmatpush1.msra.mxu0 0.0
    %122 = vmatprep.subr.mxu0 0.0
    %123 = vmatpush1.msra.mxu0 0.0
    %124 = vmatprep.subr.mxu0 0.0
    %125 = vmatpush1.msra.mxu0 0.0
    %126 = vmatprep.subr.mxu0 0.0
    %127 = vmatpush1.msra.mxu0 0.0
    %128 = vmatprep.subr.mxu0 0.0
    %129 = vmatpush1.msra.mxu0 0.0
    %130 = vmatprep.subr.mxu0 0.0
    %131 = vmatpush1.msra.mxu0 0.0
    %132 = vmatprep.subr.mxu0 0.0
    %133 = vmatpush1.msra.mxu0 0.0
    %134 = vmatprep.subr.mxu0 0.0
    %135 = vmatpush1.msra.mxu0 0.0
    %136 = vmatprep.subr.mxu0 0.0
    %137 = vmatpush1.msra.mxu0 0.0
    %138 = vmatprep.subr.mxu0 0.0
    %139 = vmatpush1.msra.mxu0 0.0
    %140 = vmatprep.subr.mxu0 0.0
    %141 = vmatpush1.msra.mxu0 0.0
    %142 = vmatprep.subr.mxu0 0.0
    %143 = vmatpush1.msra.mxu0 0.0
    %144 = vmatprep.subr.mxu0 0.0
    %145 = vmatpush1.msra.mxu0 0.0
    %146 = vmatprep.subr.mxu0 0.0
    %147 = vmatpush1.msra.mxu0 0.0
    %148 = vmatprep.subr.mxu0 0.0
    %149 = vmatpush1.msra.mxu0 0.0
    %150 = vmatprep.subr.mxu0 0.0
    %151 = vmatpush1.msra.mxu0 0.0
    %152 = vmatprep.subr.mxu0 0.0
    %153 = vmatpush1.msra.mxu0 0.0
    %154 = vmatprep.subr.mxu0 0.0
    %155 = vmatpush1.msra.mxu0 0.0
    %156 = vmatprep.subr.mxu0 0.0
    %157 = vmatpush1.msra.mxu0 0.0
    %158 = vmatprep.subr.mxu0 0.0
    %159 = vmatpush1.msra.mxu0 0.0
    %160 = vmatprep.mubr.f32.mxu0 0.0
    %161 = vmatmul.mubr.f32.gmra.mrb[0].mxu0 %v91
    %v162 = vpop.f32.mrb[0].mxu0
    %v163 = vadd.f32 0.0, %v162
    %v164 = vpop.f32.mrb[0].mxu0
    %165 = vmatprep.mubr.f32.mxu0 0.0
    %166 = vmatmul.mubr.f32.gmra.mrb[0].mxu0 %v94
    %v167 = vpop.f32.mrb[0].mxu0
    %v168 = vadd.f32 0.0, %v167
    %v169 = vpop.f32.mrb[0].mxu0
    %170 = vdwg.mxu0
    %v171 = vld [vmem:[%s3] sm:$0x1]
    %v173 = vlaneseq
    %v174 = vshrl.u32 %v173, 7
    %v175 = vsub.s32 0, %v174
    %v176 = vrot.slane %v171, %v175
    %v178 = vadd.f32 %v163, %v176
    %v179 = vadd.f32 %v168, %v176
    %v180 = vld [vmem:[%s4] sm:$0x1]
    %v182 = vlaneseq
    %v183 = vshrl.u32 %v182, 7
    %v184 = vsub.s32 0, %v183
    %v185 = vrot.slane %v180, %v184
    %186 = vrot.lane.b32.xlu0 %v185, 64
    %v187 = vpop.permute.xlu0 %186
    %v189 = vadd.f32 %v163, %v187
    %v190 = vadd.f32 %v168, %v187
    %193 = vrot.lane.b32.xlu0 %v178, 120
    %v194 = vpop.permute.xlu0 %193
    %195 = vrot.lane.b32.xlu0 %v179, 120
    %v196 = vpop.permute.xlu0 %195
    %197 = vrot.lane.b32.xlu0 %v178, 112
    %v198 = vpop.permute.xlu0 %197
    %199 = vrot.lane.b32.xlu0 %v179, 112
    %v200 = vpop.permute.xlu0 %199
    %201 = vrot.lane.b32.xlu0 %v178, 104
    %v202 = vpop.permute.xlu0 %201
    %203 = vrot.lane.b32.xlu0 %v179, 104
    %v204 = vpop.permute.xlu0 %203
    %207 = vrot.lane.b32.xlu0 %v163, 120
    %v208 = vpop.permute.xlu0 %207
    %209 = vrot.lane.b32.xlu0 %v168, 120
    %v210 = vpop.permute.xlu0 %209
    %211 = vrot.lane.b32.xlu0 %v163, 112
    %v212 = vpop.permute.xlu0 %211
    %213 = vrot.lane.b32.xlu0 %v168, 112
    %v214 = vpop.permute.xlu0 %213
    %215 = vrot.lane.b32.xlu0 %v163, 104
    %v216 = vpop.permute.xlu0 %215
    %217 = vrot.lane.b32.xlu0 %v168, 104
    %v218 = vpop.permute.xlu0 %217
    %221 = vrot.lane.b32.xlu0 %v189, 120
    %v222 = vpop.permute.xlu0 %221
    %223 = vrot.lane.b32.xlu0 %v190, 120
    %v224 = vpop.permute.xlu0 %223
    %225 = vrot.lane.b32.xlu0 %v189, 112
    %v226 = vpop.permute.xlu0 %225
    %227 = vrot.lane.b32.xlu0 %v190, 112
    %v228 = vpop.permute.xlu0 %227
    %229 = vrot.lane.b32.xlu0 %v189, 104
    %v230 = vpop.permute.xlu0 %229
    %231 = vrot.lane.b32.xlu0 %v190, 104
    %v232 = vpop.permute.xlu0 %231
    %233 = vrot.lane.b32.xlu0 %v163, 96
    %v234 = vpop.permute.xlu0 %233
    %235 = vrot.lane.b32.xlu0 %v168, 96
    %v236 = vpop.permute.xlu0 %235
    %vm237 = vcmask 64512
    %v238 = vsel %vm237, %v178, 0
    %v240 = vsel %vm237, %v179, 0
    %v242 = vsel %vm237, %v234, 0
    %v244 = vsel %vm237, %v236, 0
    %246 = vmatprep.subr.mxu0 0.0
    %247 = vmatpush1.xpose.msra.mxu0 %v242
    %248 = vmatprep.subr.mxu0 0.0
    %249 = vmatpush1.xpose.msra.mxu0 %v244
    %250 = vmatprep.subr.mxu0 0.0
    %251 = vmatpush1.xpose.msra.mxu0 0.0
    %252 = vmatprep.subr.mxu0 0.0
    %253 = vmatpush1.xpose.msra.mxu0 0.0
    %254 = vmatprep.subr.mxu0 0.0
    %255 = vmatpush1.xpose.msra.mxu0 0.0
    %256 = vmatprep.subr.mxu0 0.0
    %257 = vmatpush1.xpose.msra.mxu0 0.0
    %258 = vmatprep.subr.mxu0 0.0
    %259 = vmatpush1.xpose.msra.mxu0 0.0
    %260 = vmatprep.subr.mxu0 0.0
    %261 = vmatpush1.xpose.msra.mxu0 0.0
    %262 = vmatprep.subr.mxu0 0.0
    %263 = vmatpush1.xpose.msra.mxu0 0.0
    %264 = vmatprep.subr.mxu0 0.0
    %265 = vmatpush1.xpose.msra.mxu0 0.0
    %266 = vmatprep.subr.mxu0 0.0
    %267 = vmatpush1.xpose.msra.mxu0 0.0
    %268 = vmatprep.subr.mxu0 0.0
    %269 = vmatpush1.xpose.msra.mxu0 0.0
    %270 = vmatprep.subr.mxu0 0.0
    %271 = vmatpush1.xpose.msra.mxu0 0.0
    %272 = vmatprep.subr.mxu0 0.0
    %273 = vmatpush1.xpose.msra.mxu0 0.0
    %274 = vmatprep.subr.mxu0 0.0
    %275 = vmatpush1.xpose.msra.mxu0 0.0
    %276 = vmatprep.subr.mxu0 0.0
    %277 = vmatpush1.xpose.msra.mxu0 0.0
    %278 = vmatprep.subr.mxu0 0.0
    %279 = vmatpush1.xpose.msra.mxu0 0.0
    %280 = vmatprep.subr.mxu0 0.0
    %281 = vmatpush1.xpose.msra.mxu0 0.0
    %282 = vmatprep.subr.mxu0 0.0
    %283 = vmatpush1.xpose.msra.mxu0 0.0
    %284 = vmatprep.subr.mxu0 0.0
    %285 = vmatpush1.xpose.msra.mxu0 0.0
    %286 = vmatprep.subr.mxu0 0.0
    %287 = vmatpush1.xpose.msra.mxu0 0.0
    %288 = vmatprep.subr.mxu0 0.0
    %289 = vmatpush1.xpose.msra.mxu0 0.0
    %290 = vmatprep.subr.mxu0 0.0
    %291 = vmatpush1.xpose.msra.mxu0 0.0
    %292 = vmatprep.subr.mxu0 0.0
    %293 = vmatpush1.xpose.msra.mxu0 0.0
    %294 = vmatprep.subr.mxu0 0.0
    %295 = vmatpush1.xpose.msra.mxu0 0.0
    %296 = vmatprep.subr.mxu0 0.0
    %297 = vmatpush1.xpose.msra.mxu0 0.0
    %298 = vmatprep.subr.mxu0 0.0
    %299 = vmatpush1.xpose.msra.mxu0 0.0
    %300 = vmatprep.subr.mxu0 0.0
    %301 = vmatpush1.xpose.msra.mxu0 0.0
    %302 = vmatprep.subr.mxu0 0.0
    %303 = vmatpush1.xpose.msra.mxu0 0.0
    %304 = vmatprep.subr.mxu0 0.0
    %305 = vmatpush1.xpose.msra.mxu0 0.0
    %306 = vmatprep.subr.mxu0 0.0
    %307 = vmatpush1.xpose.msra.mxu0 0.0
    %308 = vmatprep.subr.mxu0 0.0
    %309 = vmatpush1.xpose.msra.mxu0 0.0
    %310 = vmatprep.mubr.f32.mxu0 0.0
    %311 = vmatmul.mubr.f32.gmra.mrb[0].mxu0 %v238
    %v312 = vpop.f32.mrb[0].mxu0
    %v313 = vadd.f32 0.0, %v312
    %v314 = vpop.f32.mrb[0].mxu0
    %315 = vmatprep.mubr.f32.mxu0 0.0
    %316 = vmatmul.mubr.f32.gmra.mrb[0].mxu0 %v240
    %v317 = vpop.f32.mrb[0].mxu0
    %v318 = vadd.f32 0.0, %v317
    %v319 = vpop.f32.mrb[0].mxu0
    %320 = vdwg.mxu0
    %321 = vrot.lane.b32.xlu0 %v208, 96
    %v322 = vpop.permute.xlu0 %321
    %323 = vrot.lane.b32.xlu0 %v210, 96
    %v324 = vpop.permute.xlu0 %323
    %v325 = vsel %vm237, %v194, 0
    %v327 = vsel %vm237, %v196, 0
    %v329 = vsel %vm237, %v322, 0
    %v331 = vsel %vm237, %v324, 0
    %333 = vmatprep.subr.mxu0 0.0
    %334 = vmatpush1.xpose.msra.mxu0 %v329
    %335 = vmatprep.subr.mxu0 0.0
    %336 = vmatpush1.xpose.msra.mxu0 %v331
    %337 = vmatprep.subr.mxu0 0.0
    %338 = vmatpush1.xpose.msra.mxu0 0.0
    %339 = vmatprep.subr.mxu0 0.0
    %340 = vmatpush1.xpose.msra.mxu0 0.0
    %341 = vmatprep.subr.mxu0 0.0
    %342 = vmatpush1.xpose.msra.mxu0 0.0
    %343 = vmatprep.subr.mxu0 0.0
    %344 = vmatpush1.xpose.msra.mxu0 0.0
    %345 = vmatprep.subr.mxu0 0.0
    %346 = vmatpush1.xpose.msra.mxu0 0.0
    %347 = vmatprep.subr.mxu0 0.0
    %348 = vmatpush1.xpose.msra.mxu0 0.0
    %349 = vmatprep.subr.mxu0 0.0
    %350 = vmatpush1.xpose.msra.mxu0 0.0
    %351 = vmatprep.subr.mxu0 0.0
    %352 = vmatpush1.xpose.msra.mxu0 0.0
    %353 = vmatprep.subr.mxu0 0.0
    %354 = vmatpush1.xpose.msra.mxu0 0.0
    %355 = vmatprep.subr.mxu0 0.0
    %356 = vmatpush1.xpose.msra.mxu0 0.0
    %357 = vmatprep.subr.mxu0 0.0
    %358 = vmatpush1.xpose.msra.mxu0 0.0
    %359 = vmatprep.subr.mxu0 0.0
    %360 = vmatpush1.xpose.msra.mxu0 0.0
    %361 = vmatprep.subr.mxu0 0.0
    %362 = vmatpush1.xpose.msra.mxu0 0.0
    %363 = vmatprep.subr.mxu0 0.0
    %364 = vmatpush1.xpose.msra.mxu0 0.0
    %365 = vmatprep.subr.mxu0 0.0
    %366 = vmatpush1.xpose.msra.mxu0 0.0
    %367 = vmatprep.subr.mxu0 0.0
    %368 = vmatpush1.xpose.msra.mxu0 0.0
    %369 = vmatprep.subr.mxu0 0.0
    %370 = vmatpush1.xpose.msra.mxu0 0.0
    %371 = vmatprep.subr.mxu0 0.0
    %372 = vmatpush1.xpose.msra.mxu0 0.0
    %373 = vmatprep.subr.mxu0 0.0
    %374 = vmatpush1.xpose.msra.mxu0 0.0
    %375 = vmatprep.subr.mxu0 0.0
    %376 = vmatpush1.xpose.msra.mxu0 0.0
    %377 = vmatprep.subr.mxu0 0.0
    %378 = vmatpush1.xpose.msra.mxu0 0.0
    %379 = vmatprep.subr.mxu0 0.0
    %380 = vmatpush1.xpose.msra.mxu0 0.0
    %381 = vmatprep.subr.mxu0 0.0
    %382 = vmatpush1.xpose.msra.mxu0 0.0
    %383 = vmatprep.subr.mxu0 0.0
    %384 = vmatpush1.xpose.msra.mxu0 0.0
    %385 = vmatprep.subr.mxu0 0.0
    %386 = vmatpush1.xpose.msra.mxu0 0.0
    %387 = vmatprep.subr.mxu0 0.0
    %388 = vmatpush1.xpose.msra.mxu0 0.0
    %389 = vmatprep.subr.mxu0 0.0
    %390 = vmatpush1.xpose.msra.mxu0 0.0
    %391 = vmatprep.subr.mxu0 0.0
    %392 = vmatpush1.xpose.msra.mxu0 0.0
    %393 = vmatprep.subr.mxu0 0.0
    %394 = vmatpush1.xpose.msra.mxu0 0.0
    %395 = vmatprep.subr.mxu0 0.0
    %396 = vmatpush1.xpose.msra.mxu0 0.0
    %397 = vmatprep.mubr.f32.mxu0 0.0
    %398 = vmatmul.mubr.f32.gmra.mrb[0].mxu0 %v325
    %v399 = vpop.f32.mrb[0].mxu0
    %v400 = vadd.f32 0.0, %v399
    %v401 = vpop.f32.mrb[0].mxu0
    %402 = vmatprep.mubr.f32.mxu0 0.0
    %403 = vmatmul.mubr.f32.gmra.mrb[0].mxu0 %v327
    %v404 = vpop.f32.mrb[0].mxu0
    %v405 = vadd.f32 0.0, %v404
    %v406 = vpop.f32.mrb[0].mxu0
    %407 = vdwg.mxu0
    %408 = vrot.lane.b32.xlu0 %v212, 96
    %v409 = vpop.permute.xlu0 %408
    %410 = vrot.lane.b32.xlu0 %v214, 96
    %v411 = vpop.permute.xlu0 %410
    %v412 = vsel %vm237, %v198, 0
    %v414 = vsel %vm237, %v200, 0
    %v416 = vsel %vm237, %v409, 0
    %v418 = vsel %vm237, %v411, 0
    %420 = vmatprep.subr.mxu0 0.0
    %421 = vmatpush1.xpose.msra.mxu0 %v416
    %422 = vmatprep.subr.mxu0 0.0
    %423 = vmatpush1.xpose.msra.mxu0 %v418
    %424 = vmatprep.subr.mxu0 0.0
    %425 = vmatpush1.xpose.msra.mxu0 0.0
    %426 = vmatprep.subr.mxu0 0.0
    %427 = vmatpush1.xpose.msra.mxu0 0.0
    %428 = vmatprep.subr.mxu0 0.0
    %429 = vmatpush1.xpose.msra.mxu0 0.0
    %430 = vmatprep.subr.mxu0 0.0
    %431 = vmatpush1.xpose.msra.mxu0 0.0
    %432 = vmatprep.subr.mxu0 0.0
    %433 = vmatpush1.xpose.msra.mxu0 0.0
    %434 = vmatprep.subr.mxu0 0.0
    %435 = vmatpush1.xpose.msra.mxu0 0.0
    %436 = vmatprep.subr.mxu0 0.0
    %437 = vmatpush1.xpose.msra.mxu0 0.0
    %438 = vmatprep.subr.mxu0 0.0
    %439 = vmatpush1.xpose.msra.mxu0 0.0
    %440 = vmatprep.subr.mxu0 0.0
    %441 = vmatpush1.xpose.msra.mxu0 0.0
    %442 = vmatprep.subr.mxu0 0.0
    %443 = vmatpush1.xpose.msra.mxu0 0.0
    %444 = vmatprep.subr.mxu0 0.0
    %445 = vmatpush1.xpose.msra.mxu0 0.0
    %446 = vmatprep.subr.mxu0 0.0
    %447 = vmatpush1.xpose.msra.mxu0 0.0
    %448 = vmatprep.subr.mxu0 0.0
    %449 = vmatpush1.xpose.msra.mxu0 0.0
    %450 = vmatprep.subr.mxu0 0.0
    %451 = vmatpush1.xpose.msra.mxu0 0.0
    %452 = vmatprep.subr.mxu0 0.0
    %453 = vmatpush1.xpose.msra.mxu0 0.0
    %454 = vmatprep.subr.mxu0 0.0
    %455 = vmatpush1.xpose.msra.mxu0 0.0
    %456 = vmatprep.subr.mxu0 0.0
    %457 = vmatpush1.xpose.msra.mxu0 0.0
    %458 = vmatprep.subr.mxu0 0.0
    %459 = vmatpush1.xpose.msra.mxu0 0.0
    %460 = vmatprep.subr.mxu0 0.0
    %461 = vmatpush1.xpose.msra.mxu0 0.0
    %462 = vmatprep.subr.mxu0 0.0
    %463 = vmatpush1.xpose.msra.mxu0 0.0
    %464 = vmatprep.subr.mxu0 0.0
    %465 = vmatpush1.xpose.msra.mxu0 0.0
    %466 = vmatprep.subr.mxu0 0.0
    %467 = vmatpush1.xpose.msra.mxu0 0.0
    %468 = vmatprep.subr.mxu0 0.0
    %469 = vmatpush1.xpose.msra.mxu0 0.0
    %470 = vmatprep.subr.mxu0 0.0
    %471 = vmatpush1.xpose.msra.mxu0 0.0
    %472 = vmatprep.subr.mxu0 0.0
    %473 = vmatpush1.xpose.msra.mxu0 0.0
    %474 = vmatprep.subr.mxu0 0.0
    %475 = vmatpush1.xpose.msra.mxu0 0.0
    %476 = vmatprep.subr.mxu0 0.0
    %477 = vmatpush1.xpose.msra.mxu0 0.0
    %478 = vmatprep.subr.mxu0 0.0
    %479 = vmatpush1.xpose.msra.mxu0 0.0
    %480 = vmatprep.subr.mxu0 0.0
    %481 = vmatpush1.xpose.msra.mxu0 0.0
    %482 = vmatprep.subr.mxu0 0.0
    %483 = vmatpush1.xpose.msra.mxu0 0.0
    %484 = vmatprep.mubr.f32.mxu0 0.0
    %485 = vmatmul.mubr.f32.gmra.mrb[0].mxu0 %v412
    %v486 = vpop.f32.mrb[0].mxu0
    %v487 = vadd.f32 0.0, %v486
    %v488 = vpop.f32.mrb[0].mxu0
    %489 = vmatprep.mubr.f32.mxu0 0.0
    %490 = vmatmul.mubr.f32.gmra.mrb[0].mxu0 %v414
    %v491 = vpop.f32.mrb[0].mxu0
    %v492 = vadd.f32 0.0, %v491
    %v493 = vpop.f32.mrb[0].mxu0
    %494 = vdwg.mxu0
    %495 = vrot.lane.b32.xlu0 %v216, 96
    %v496 = vpop.permute.xlu0 %495
    %497 = vrot.lane.b32.xlu0 %v218, 96
    %v498 = vpop.permute.xlu0 %497
    %v499 = vsel %vm237, %v202, 0
    %v501 = vsel %vm237, %v204, 0
    %v503 = vsel %vm237, %v496, 0
    %v505 = vsel %vm237, %v498, 0
    %507 = vmatprep.subr.mxu0 0.0
    %508 = vmatpush1.xpose.msra.mxu0 %v503
    %509 = vmatprep.subr.mxu0 0.0
    %510 = vmatpush1.xpose.msra.mxu0 %v505
    %511 = vmatprep.subr.mxu0 0.0
    %512 = vmatpush1.xpose.msra.mxu0 0.0
    %513 = vmatprep.subr.mxu0 0.0
    %514 = vmatpush1.xpose.msra.mxu0 0.0
    %515 = vmatprep.subr.mxu0 0.0
    %516 = vmatpush1.xpose.msra.mxu0 0.0
    %517 = vmatprep.subr.mxu0 0.0
    %518 = vmatpush1.xpose.msra.mxu0 0.0
    %519 = vmatprep.subr.mxu0 0.0
    %520 = vmatpush1.xpose.msra.mxu0 0.0
    %521 = vmatprep.subr.mxu0 0.0
    %522 = vmatpush1.xpose.msra.mxu0 0.0
    %523 = vmatprep.subr.mxu0 0.0
    %524 = vmatpush1.xpose.msra.mxu0 0.0
    %525 = vmatprep.subr.mxu0 0.0
    %526 = vmatpush1.xpose.msra.mxu0 0.0
    %527 = vmatprep.subr.mxu0 0.0
    %528 = vmatpush1.xpose.msra.mxu0 0.0
    %529 = vmatprep.subr.mxu0 0.0
    %530 = vmatpush1.xpose.msra.mxu0 0.0
    %531 = vmatprep.subr.mxu0 0.0
    %532 = vmatpush1.xpose.msra.mxu0 0.0
    %533 = vmatprep.subr.mxu0 0.0
    %534 = vmatpush1.xpose.msra.mxu0 0.0
    %535 = vmatprep.subr.mxu0 0.0
    %536 = vmatpush1.xpose.msra.mxu0 0.0
    %537 = vmatprep.subr.mxu0 0.0
    %538 = vmatpush1.xpose.msra.mxu0 0.0
    %539 = vmatprep.subr.mxu0 0.0
    %540 = vmatpush1.xpose.msra.mxu0 0.0
    %541 = vmatprep.subr.mxu0 0.0
    %542 = vmatpush1.xpose.msra.mxu0 0.0
    %543 = vmatprep.subr.mxu0 0.0
    %544 = vmatpush1.xpose.msra.mxu0 0.0
    %545 = vmatprep.subr.mxu0 0.0
    %546 = vmatpush1.xpose.msra.mxu0 0.0
    %547 = vmatprep.subr.mxu0 0.0
    %548 = vmatpush1.xpose.msra.mxu0 0.0
    %549 = vmatprep.subr.mxu0 0.0
    %550 = vmatpush1.xpose.msra.mxu0 0.0
    %551 = vmatprep.subr.mxu0 0.0
    %552 = vmatpush1.xpose.msra.mxu0 0.0
    %553 = vmatprep.subr.mxu0 0.0
    %554 = vmatpush1.xpose.msra.mxu0 0.0
    %555 = vmatprep.subr.mxu0 0.0
    %556 = vmatpush1.xpose.msra.mxu0 0.0
    %557 = vmatprep.subr.mxu0 0.0
    %558 = vmatpush1.xpose.msra.mxu0 0.0
    %559 = vmatprep.subr.mxu0 0.0
    %560 = vmatpush1.xpose.msra.mxu0 0.0
    %561 = vmatprep.subr.mxu0 0.0
    %562 = vmatpush1.xpose.msra.mxu0 0.0
    %563 = vmatprep.subr.mxu0 0.0
    %564 = vmatpush1.xpose.msra.mxu0 0.0
    %565 = vmatprep.subr.mxu0 0.0
    %566 = vmatpush1.xpose.msra.mxu0 0.0
    %567 = vmatprep.subr.mxu0 0.0
    %568 = vmatpush1.xpose.msra.mxu0 0.0
    %569 = vmatprep.subr.mxu0 0.0
    %570 = vmatpush1.xpose.msra.mxu0 0.0
    %571 = vmatprep.mubr.f32.mxu0 0.0
    %572 = vmatmul.mubr.f32.gmra.mrb[0].mxu0 %v499
    %v573 = vpop.f32.mrb[0].mxu0
    %v574 = vadd.f32 0.0, %v573
    %v575 = vpop.f32.mrb[0].mxu0
    %576 = vmatprep.mubr.f32.mxu0 0.0
    %577 = vmatmul.mubr.f32.gmra.mrb[0].mxu0 %v501
    %v578 = vpop.f32.mrb[0].mxu0
    %v579 = vadd.f32 0.0, %v578
    %v580 = vpop.f32.mrb[0].mxu0
    %581 = vdwg.mxu0
    %v582 = vmul.f32 %v313, 0.35355338
    %v583 = vmul.f32 %v318, 0.35355338
    %v584 = vmul.f32 %v400, 0.35355338
    %v585 = vmul.f32 %v405, 0.35355338
    %v586 = vmul.f32 %v487, 0.35355338
    %v587 = vmul.f32 %v492, 0.35355338
    %v588 = vmul.f32 %v574, 0.35355338
    %v589 = vmul.f32 %v579, 0.35355338
    %v590 = vsel %vm83, 1, 0
    %v591 = vsel %vm84, 1, 0
    %vm592 = vcmp.eq.s32.totalorder %v590, 1
    %vm593 = vcmp.eq.s32.totalorder %v591, 1
    %v594 = vsel %vm592, %v582, -3.4028235e+38
    %v595 = vsel %vm593, %v583, -3.4028235e+38
    %v596 = vsel %vm592, %v584, -3.4028235e+38
    %v597 = vsel %vm593, %v585, -3.4028235e+38
    %v598 = vsel %vm592, %v586, -3.4028235e+38
    %v599 = vsel %vm593, %v587, -3.4028235e+38
    %v600 = vsel %vm592, %v588, -3.4028235e+38
    %v601 = vsel %vm593, %v589, -3.4028235e+38
    %vm602 = vcmask 130048
    %v603 = vsel %vm602, %v594, -inf
    %604 = vmax.xlane.f32.xlu0 %v603
    %v605 = vpop.xlane.xlu0 %604
    %v606 = vsel %vm602, %v595, -inf
    %607 = vmax.xlane.f32.xlu0 %v606
    %v608 = vpop.xlane.xlu0 %607
    %v609 = vsel %vm602, %v596, -inf
    %610 = vmax.xlane.f32.xlu0 %v609
    %v611 = vpop.xlane.xlu0 %610
    %v612 = vsel %vm602, %v597, -inf
    %613 = vmax.xlane.f32.xlu0 %v612
    %v614 = vpop.xlane.xlu0 %613
    %v615 = vsel %vm602, %v598, -inf
    %616 = vmax.xlane.f32.xlu0 %v615
    %v617 = vpop.xlane.xlu0 %616
    %v618 = vsel %vm602, %v599, -inf
    %619 = vmax.xlane.f32.xlu0 %v618
    %v620 = vpop.xlane.xlu0 %619
    %v621 = vsel %vm602, %v600, -inf
    %622 = vmax.xlane.f32.xlu0 %v621
    %v623 = vpop.xlane.xlu0 %622
    %v624 = vsel %vm602, %v601, -inf
    %625 = vmax.xlane.f32.xlu0 %v624
    %v626 = vpop.xlane.xlu0 %625
    %v627 = vsub.f32 %v594, %v605
    %v628 = vsub.f32 %v595, %v608
    %v629 = vsub.f32 %v596, %v611
    %v630 = vsub.f32 %v597, %v614
    %v631 = vsub.f32 %v598, %v617
    %v632 = vsub.f32 %v599, %v620
    %v633 = vsub.f32 %v600, %v623
    %v634 = vsub.f32 %v601, %v626
    %v635 = vmul.f32 %v627, 1.442695
    %v636 = vpow.pop %v635
    %v637 = vmul.f32 %v628, 1.442695
    %v638 = vpow.pop %v637
    %v639 = vmul.f32 %v629, 1.442695
    %v640 = vpow.pop %v639
    %v641 = vmul.f32 %v630, 1.442695
    %v642 = vpow.pop %v641
    %v643 = vmul.f32 %v631, 1.442695
    %v644 = vpow.pop %v643
    %v645 = vmul.f32 %v632, 1.442695
    %v646 = vpow.pop %v645
    %v647 = vmul.f32 %v633, 1.442695
    %v648 = vpow.pop %v647
    %v649 = vmul.f32 %v634, 1.442695
    %v650 = vpow.pop %v649
    %v651 = vsel %vm602, %v636, 0.0
    %652 = vadd.xlane.f32.xlu0 %v651
    %v653 = vpop.xlane.xlu0 %652
    %v654 = vsel %vm602, %v638, 0.0
    %655 = vadd.xlane.f32.xlu0 %v654
    %v656 = vpop.xlane.xlu0 %655
    %v657 = vsel %vm602, %v640, 0.0
    %658 = vadd.xlane.f32.xlu0 %v657
    %v659 = vpop.xlane.xlu0 %658
    %v660 = vsel %vm602, %v642, 0.0
    %661 = vadd.xlane.f32.xlu0 %v660
    %v662 = vpop.xlane.xlu0 %661
    %v663 = vsel %vm602, %v644, 0.0
    %664 = vadd.xlane.f32.xlu0 %v663
    %v665 = vpop.xlane.xlu0 %664
    %v666 = vsel %vm602, %v646, 0.0
    %667 = vadd.xlane.f32.xlu0 %v666
    %v668 = vpop.xlane.xlu0 %667
    %v669 = vsel %vm602, %v648, 0.0
    %670 = vadd.xlane.f32.xlu0 %v669
    %v671 = vpop.xlane.xlu0 %670
    %v672 = vsel %vm602, %v650, 0.0
    %673 = vadd.xlane.f32.xlu0 %v672
    %v674 = vpop.xlane.xlu0 %673
    %v675 = vrcp.pop %v653
    %v676 = vmul.f32 %v636, %v675
    %v677 = vrcp.pop %v656
    %v678 = vmul.f32 %v638, %v677
    %v679 = vrcp.pop %v659
    %v680 = vmul.f32 %v640, %v679
    %v681 = vrcp.pop %v662
    %v682 = vmul.f32 %v642, %v681
    %v683 = vrcp.pop %v665
    %v684 = vmul.f32 %v644, %v683
    %v685 = vrcp.pop %v668
    %v686 = vmul.f32 %v646, %v685
    %v687 = vrcp.pop %v671
    %v688 = vmul.f32 %v648, %v687
    %v689 = vrcp.pop %v674
    %v690 = vmul.f32 %v650, %v689
    %v691 = vsel %vm592, %v676, 0.0
    %v692 = vsel %vm593, %v678, 0.0
    %v693 = vsel %vm592, %v680, 0.0
    %v694 = vsel %vm593, %v682, 0.0
    %v695 = vsel %vm592, %v684, 0.0
    %v696 = vsel %vm593, %v686, 0.0
    %v697 = vsel %vm592, %v688, 0.0
    %v698 = vsel %vm593, %v690, 0.0
    %699 = vrot.lane.b32.xlu0 %v189, 64
    %v700 = vpop.permute.xlu0 %699
    %701 = vrot.lane.b32.xlu0 %v190, 64
    %v702 = vpop.permute.xlu0 %701
    %v706 = vsel %vm602, %v691, 0
    %v709 = vsel %vm602, %v692, 0
    %711 = vmatprep.subr.mxu0 0.0
    %712 = vmatpush1.msra.mxu0 %v700
    %713 = vmatprep.subr.mxu0 0.0
    %714 = vmatpush1.msra.mxu0 %v702
    %715 = vmatprep.subr.mxu0 0.0
    %716 = vmatpush1.msra.mxu0 0.0
    %717 = vmatprep.subr.mxu0 0.0
    %718 = vmatpush1.msra.mxu0 0.0
    %719 = vmatprep.subr.mxu0 0.0
    %720 = vmatpush1.msra.mxu0 0.0
    %721 = vmatprep.subr.mxu0 0.0
    %722 = vmatpush1.msra.mxu0 0.0
    %723 = vmatprep.subr.mxu0 0.0
    %724 = vmatpush1.msra.mxu0 0.0
    %725 = vmatprep.subr.mxu0 0.0
    %726 = vmatpush1.msra.mxu0 0.0
    %727 = vmatprep.subr.mxu0 0.0
    %728 = vmatpush1.msra.mxu0 0.0
    %729 = vmatprep.subr.mxu0 0.0
    %730 = vmatpush1.msra.mxu0 0.0
    %731 = vmatprep.subr.mxu0 0.0
    %732 = vmatpush1.msra.mxu0 0.0
    %733 = vmatprep.subr.mxu0 0.0
    %734 = vmatpush1.msra.mxu0 0.0
    %735 = vmatprep.subr.mxu0 0.0
    %736 = vmatpush1.msra.mxu0 0.0
    %737 = vmatprep.subr.mxu0 0.0
    %738 = vmatpush1.msra.mxu0 0.0
    %739 = vmatprep.subr.mxu0 0.0
    %740 = vmatpush1.msra.mxu0 0.0
    %741 = vmatprep.subr.mxu0 0.0
    %742 = vmatpush1.msra.mxu0 0.0
    %743 = vmatprep.subr.mxu0 0.0
    %744 = vmatpush1.msra.mxu0 0.0
    %745 = vmatprep.subr.mxu0 0.0
    %746 = vmatpush1.msra.mxu0 0.0
    %747 = vmatprep.subr.mxu0 0.0
    %748 = vmatpush1.msra.mxu0 0.0
    %749 = vmatprep.subr.mxu0 0.0
    %750 = vmatpush1.msra.mxu0 0.0
    %751 = vmatprep.subr.mxu0 0.0
    %752 = vmatpush1.msra.mxu0 0.0
    %753 = vmatprep.subr.mxu0 0.0
    %754 = vmatpush1.msra.mxu0 0.0
    %755 = vmatprep.subr.mxu0 0.0
    %756 = vmatpush1.msra.mxu0 0.0
    %757 = vmatprep.subr.mxu0 0.0
    %758 = vmatpush1.msra.mxu0 0.0
    %759 = vmatprep.subr.mxu0 0.0
    %760 = vmatpush1.msra.mxu0 0.0
    %761 = vmatprep.subr.mxu0 0.0
    %762 = vmatpush1.msra.mxu0 0.0
    %763 = vmatprep.subr.mxu0 0.0
    %764 = vmatpush1.msra.mxu0 0.0
    %765 = vmatprep.subr.mxu0 0.0
    %766 = vmatpush1.msra.mxu0 0.0
    %767 = vmatprep.subr.mxu0 0.0
    %768 = vmatpush1.msra.mxu0 0.0
    %769 = vmatprep.subr.mxu0 0.0
    %770 = vmatpush1.msra.mxu0 0.0
    %771 = vmatprep.subr.mxu0 0.0
    %772 = vmatpush1.msra.mxu0 0.0
    %773 = vmatprep.subr.mxu0 0.0
    %774 = vmatpush1.msra.mxu0 0.0
    %775 = vmatprep.mubr.f32.mxu0 0.0
    %776 = vmatmul.mubr.f32.gmra.mrb[0].mxu0 %v706
    %v777 = vpop.f32.mrb[0].mxu0
    %v778 = vadd.f32 0.0, %v777
    %v779 = vpop.f32.mrb[0].mxu0
    %780 = vmatprep.mubr.f32.mxu0 0.0
    %781 = vmatmul.mubr.f32.gmra.mrb[0].mxu0 %v709
    %v782 = vpop.f32.mrb[0].mxu0
    %v783 = vadd.f32 0.0, %v782
    %v784 = vpop.f32.mrb[0].mxu0
    %785 = vdwg.mxu0
    %786 = vrot.lane.b32.xlu0 %v222, 64
    %v787 = vpop.permute.xlu0 %786
    %788 = vrot.lane.b32.xlu0 %v224, 64
    %v789 = vpop.permute.xlu0 %788
    %v793 = vsel %vm602, %v693, 0
    %v796 = vsel %vm602, %v694, 0
    %798 = vmatprep.subr.mxu0 0.0
    %799 = vmatpush1.msra.mxu0 %v787
    %800 = vmatprep.subr.mxu0 0.0
    %801 = vmatpush1.msra.mxu0 %v789
    %802 = vmatprep.subr.mxu0 0.0
    %803 = vmatpush1.msra.mxu0 0.0
    %804 = vmatprep.subr.mxu0 0.0
    %805 = vmatpush1.msra.mxu0 0.0
    %806 = vmatprep.subr.mxu0 0.0
    %807 = vmatpush1.msra.mxu0 0.0
    %808 = vmatprep.subr.mxu0 0.0
    %809 = vmatpush1.msra.mxu0 0.0
    %810 = vmatprep.subr.mxu0 0.0
    %811 = vmatpush1.msra.mxu0 0.0
    %812 = vmatprep.subr.mxu0 0.0
    %813 = vmatpush1.msra.mxu0 0.0
    %814 = vmatprep.subr.mxu0 0.0
    %815 = vmatpush1.msra.mxu0 0.0
    %816 = vmatprep.subr.mxu0 0.0
    %817 = vmatpush1.msra.mxu0 0.0
    %818 = vmatprep.subr.mxu0 0.0
    %819 = vmatpush1.msra.mxu0 0.0
    %820 = vmatprep.subr.mxu0 0.0
    %821 = vmatpush1.msra.mxu0 0.0
    %822 = vmatprep.subr.mxu0 0.0
    %823 = vmatpush1.msra.mxu0 0.0
    %824 = vmatprep.subr.mxu0 0.0
    %825 = vmatpush1.msra.mxu0 0.0
    %826 = vmatprep.subr.mxu0 0.0
    %827 = vmatpush1.msra.mxu0 0.0
    %828 = vmatprep.subr.mxu0 0.0
    %829 = vmatpush1.msra.mxu0 0.0
    %830 = vmatprep.subr.mxu0 0.0
    %831 = vmatpush1.msra.mxu0 0.0
    %832 = vmatprep.subr.mxu0 0.0
    %833 = vmatpush1.msra.mxu0 0.0
    %834 = vmatprep.subr.mxu0 0.0
    %835 = vmatpush1.msra.mxu0 0.0
    %836 = vmatprep.subr.mxu0 0.0
    %837 = vmatpush1.msra.mxu0 0.0
    %838 = vmatprep.subr.mxu0 0.0
    %839 = vmatpush1.msra.mxu0 0.0
    %840 = vmatprep.subr.mxu0 0.0
    %841 = vmatpush1.msra.mxu0 0.0
    %842 = vmatprep.subr.mxu0 0.0
    %843 = vmatpush1.msra.mxu0 0.0
    %844 = vmatprep.subr.mxu0 0.0
    %845 = vmatpush1.msra.mxu0 0.0
    %846 = vmatprep.subr.mxu0 0.0
    %847 = vmatpush1.msra.mxu0 0.0
    %848 = vmatprep.subr.mxu0 0.0
    %849 = vmatpush1.msra.mxu0 0.0
    %850 = vmatprep.subr.mxu0 0.0
    %851 = vmatpush1.msra.mxu0 0.0
    %852 = vmatprep.subr.mxu0 0.0
    %853 = vmatpush1.msra.mxu0 0.0
    %854 = vmatprep.subr.mxu0 0.0
    %855 = vmatpush1.msra.mxu0 0.0
    %856 = vmatprep.subr.mxu0 0.0
    %857 = vmatpush1.msra.mxu0 0.0
    %858 = vmatprep.subr.mxu0 0.0
    %859 = vmatpush1.msra.mxu0 0.0
    %860 = vmatprep.subr.mxu0 0.0
    %861 = vmatpush1.msra.mxu0 0.0
    %862 = vmatprep.mubr.f32.mxu0 0.0
    %863 = vmatmul.mubr.f32.gmra.mrb[0].mxu0 %v793
    %v864 = vpop.f32.mrb[0].mxu0
    %v865 = vadd.f32 0.0, %v864
    %v866 = vpop.f32.mrb[0].mxu0
    %867 = vmatprep.mubr.f32.mxu0 0.0
    %868 = vmatmul.mubr.f32.gmra.mrb[0].mxu0 %v796
    %v869 = vpop.f32.mrb[0].mxu0
    %v870 = vadd.f32 0.0, %v869
    %v871 = vpop.f32.mrb[0].mxu0
    %872 = vdwg.mxu0
    %873 = vrot.lane.b32.xlu0 %v226, 64
    %v874 = vpop.permute.xlu0 %873
    %875 = vrot.lane.b32.xlu0 %v228, 64
    %v876 = vpop.permute.xlu0 %875
    %v880 = vsel %vm602, %v695, 0
    %v883 = vsel %vm602, %v696, 0
    %885 = vmatprep.subr.mxu0 0.0
    %886 = vmatpush1.msra.mxu0 %v874
    %887 = vmatprep.subr.mxu0 0.0
    %888 = vmatpush1.msra.mxu0 %v876
    %889 = vmatprep.subr.mxu0 0.0
    %890 = vmatpush1.msra.mxu0 0.0
    %891 = vmatprep.subr.mxu0 0.0
    %892 = vmatpush1.msra.mxu0 0.0
    %893 = vmatprep.subr.mxu0 0.0
    %894 = vmatpush1.msra.mxu0 0.0
    %895 = vmatprep.subr.mxu0 0.0
    %896 = vmatpush1.msra.mxu0 0.0
    %897 = vmatprep.subr.mxu0 0.0
    %898 = vmatpush1.msra.mxu0 0.0
    %899 = vmatprep.subr.mxu0 0.0
    %900 = vmatpush1.msra.mxu0 0.0
    %901 = vmatprep.subr.mxu0 0.0
    %902 = vmatpush1.msra.mxu0 0.0
    %903 = vmatprep.subr.mxu0 0.0
    %904 = vmatpush1.msra.mxu0 0.0
    %905 = vmatprep.subr.mxu0 0.0
    %906 = vmatpush1.msra.mxu0 0.0
    %907 = vmatprep.subr.mxu0 0.0
    %908 = vmatpush1.msra.mxu0 0.0
    %909 = vmatprep.subr.mxu0 0.0
    %910 = vmatpush1.msra.mxu0 0.0
    %911 = vmatprep.subr.mxu0 0.0
    %912 = vmatpush1.msra.mxu0 0.0
    %913 = vmatprep.subr.mxu0 0.0
    %914 = vmatpush1.msra.mxu0 0.0
    %915 = vmatprep.subr.mxu0 0.0
    %916 = vmatpush1.msra.mxu0 0.0
    %917 = vmatprep.subr.mxu0 0.0
    %918 = vmatpush1.msra.mxu0 0.0
    %919 = vmatprep.subr.mxu0 0.0
    %920 = vmatpush1.msra.mxu0 0.0
    %921 = vmatprep.subr.mxu0 0.0
    %922 = vmatpush1.msra.mxu0 0.0
    %923 = vmatprep.subr.mxu0 0.0
    %924 = vmatpush1.msra.mxu0 0.0
    %925 = vmatprep.subr.mxu0 0.0
    %926 = vmatpush1.msra.mxu0 0.0
    %927 = vmatprep.subr.mxu0 0.0
    %928 = vmatpush1.msra.mxu0 0.0
    %929 = vmatprep.subr.mxu0 0.0
    %930 = vmatpush1.msra.mxu0 0.0
    %931 = vmatprep.subr.mxu0 0.0
    %932 = vmatpush1.msra.mxu0 0.0
    %933 = vmatprep.subr.mxu0 0.0
    %934 = vmatpush1.msra.mxu0 0.0
    %935 = vmatprep.subr.mxu0 0.0
    %936 = vmatpush1.msra.mxu0 0.0
    %937 = vmatprep.subr.mxu0 0.0
    %938 = vmatpush1.msra.mxu0 0.0
    %939 = vmatprep.subr.mxu0 0.0
    %940 = vmatpush1.msra.mxu0 0.0
    %941 = vmatprep.subr.mxu0 0.0
    %942 = vmatpush1.msra.mxu0 0.0
    %943 = vmatprep.subr.mxu0 0.0
    %944 = vmatpush1.msra.mxu0 0.0
    %945 = vmatprep.subr.mxu0 0.0
    %946 = vmatpush1.msra.mxu0 0.0
    %947 = vmatprep.subr.mxu0 0.0
    %948 = vmatpush1.msra.mxu0 0.0
    %949 = vmatprep.mubr.f32.mxu0 0.0
    %950 = vmatmul.mubr.f32.gmra.mrb[0].mxu0 %v880
    %v951 = vpop.f32.mrb[0].mxu0
    %v952 = vadd.f32 0.0, %v951
    %v953 = vpop.f32.mrb[0].mxu0
    %954 = vmatprep.mubr.f32.mxu0 0.0
    %955 = vmatmul.mubr.f32.gmra.mrb[0].mxu0 %v883
    %v956 = vpop.f32.mrb[0].mxu0
    %v957 = vadd.f32 0.0, %v956
    %v958 = vpop.f32.mrb[0].mxu0
    %959 = vdwg.mxu0
    %960 = vrot.lane.b32.xlu0 %v230, 64
    %v961 = vpop.permute.xlu0 %960
    %962 = vrot.lane.b32.xlu0 %v232, 64
    %v963 = vpop.permute.xlu0 %962
    %v967 = vsel %vm602, %v697, 0
    %v970 = vsel %vm602, %v698, 0
    %972 = vmatprep.subr.mxu0 0.0
    %973 = vmatpush1.msra.mxu0 %v961
    %974 = vmatprep.subr.mxu0 0.0
    %975 = vmatpush1.msra.mxu0 %v963
    %976 = vmatprep.subr.mxu0 0.0
    %977 = vmatpush1.msra.mxu0 0.0
    %978 = vmatprep.subr.mxu0 0.0
    %979 = vmatpush1.msra.mxu0 0.0
    %980 = vmatprep.subr.mxu0 0.0
    %981 = vmatpush1.msra.mxu0 0.0
    %982 = vmatprep.subr.mxu0 0.0
    %983 = vmatpush1.msra.mxu0 0.0
    %984 = vmatprep.subr.mxu0 0.0
    %985 = vmatpush1.msra.mxu0 0.0
    %986 = vmatprep.subr.mxu0 0.0
    %987 = vmatpush1.msra.mxu0 0.0
    %988 = vmatprep.subr.mxu0 0.0
    %989 = vmatpush1.msra.mxu0 0.0
    %990 = vmatprep.subr.mxu0 0.0
    %991 = vmatpush1.msra.mxu0 0.0
    %992 = vmatprep.subr.mxu0 0.0
    %993 = vmatpush1.msra.mxu0 0.0
    %994 = vmatprep.subr.mxu0 0.0
    %995 = vmatpush1.msra.mxu0 0.0
    %996 = vmatprep.subr.mxu0 0.0
    %997 = vmatpush1.msra.mxu0 0.0
    %998 = vmatprep.subr.mxu0 0.0
    %999 = vmatpush1.msra.mxu0 0.0
    %1000 = vmatprep.subr.mxu0 0.0
    %1001 = vmatpush1.msra.mxu0 0.0
    %1002 = vmatprep.subr.mxu0 0.0
    %1003 = vmatpush1.msra.mxu0 0.0
    %1004 = vmatprep.subr.mxu0 0.0
    %1005 = vmatpush1.msra.mxu0 0.0
    %1006 = vmatprep.subr.mxu0 0.0
    %1007 = vmatpush1.msra.mxu0 0.0
    %1008 = vmatprep.subr.mxu0 0.0
    %1009 = vmatpush1.msra.mxu0 0.0
    %1010 = vmatprep.subr.mxu0 0.0
    %1011 = vmatpush1.msra.mxu0 0.0
    %1012 = vmatprep.subr.mxu0 0.0
    %1013 = vmatpush1.msra.mxu0 0.0
    %1014 = vmatprep.subr.mxu0 0.0
    %1015 = vmatpush1.msra.mxu0 0.0
    %1016 = vmatprep.subr.mxu0 0.0
    %1017 = vmatpush1.msra.mxu0 0.0
    %1018 = vmatprep.subr.mxu0 0.0
    %1019 = vmatpush1.msra.mxu0 0.0
    %1020 = vmatprep.subr.mxu0 0.0
    %1021 = vmatpush1.msra.mxu0 0.0
    %1022 = vmatprep.subr.mxu0 0.0
    %1023 = vmatpush1.msra.mxu0 0.0
    %1024 = vmatprep.subr.mxu0 0.0
    %1025 = vmatpush1.msra.mxu0 0.0
    %1026 = vmatprep.subr.mxu0 0.0
    %1027 = vmatpush1.msra.mxu0 0.0
    %1028 = vmatprep.subr.mxu0 0.0
    %1029 = vmatpush1.msra.mxu0 0.0
    %1030 = vmatprep.subr.mxu0 0.0
    %1031 = vmatpush1.msra.mxu0 0.0
    %1032 = vmatprep.subr.mxu0 0.0
    %1033 = vmatpush1.msra.mxu0 0.0
    %1034 = vmatprep.subr.mxu0 0.0
    %1035 = vmatpush1.msra.mxu0 0.0
    %1036 = vmatprep.mubr.f32.mxu0 0.0
    %1037 = vmatmul.mubr.f32.gmra.mrb[0].mxu0 %v967
    %v1038 = vpop.f32.mrb[0].mxu0
    %v1039 = vadd.f32 0.0, %v1038
    %v1040 = vpop.f32.mrb[0].mxu0
    %1041 = vmatprep.mubr.f32.mxu0 0.0
    %1042 = vmatmul.mubr.f32.gmra.mrb[0].mxu0 %v970
    %v1043 = vpop.f32.mrb[0].mxu0
    %v1044 = vadd.f32 0.0, %v1043
    %v1045 = vpop.f32.mrb[0].mxu0
    %1046 = vdwg.mxu0
    %v1047 = vld [vmem:[%s5] sm:$0xff]
    %v1048 = vld [vmem:[%s5 + $0x8] sm:$0xff]
    %v1049 = vld [vmem:[%s5 + $0x10] sm:$0xff]
    %v1050 = vld [vmem:[%s5 + $0x18] sm:$0xff]
    %v1052 = vsel %vm237, %v778, 0
    %v1055 = vsel %vm237, %v783, 0
    %1057 = vmatprep.subr.mxu0 0.0
    %1058 = vmatpush1.msra.mxu0 %v1047
    %1059 = vmatprep.subr.mxu0 0.0
    %1060 = vmatpush1.msra.mxu0 0.0
    %1061 = vmatprep.subr.mxu0 0.0
    %1062 = vmatpush1.msra.mxu0 0.0
    %1063 = vmatprep.subr.mxu0 0.0
    %1064 = vmatpush1.msra.mxu0 0.0
    %1065 = vmatprep.subr.mxu0 0.0
    %1066 = vmatpush1.msra.mxu0 0.0
    %1067 = vmatprep.subr.mxu0 0.0
    %1068 = vmatpush1.msra.mxu0 0.0
    %1069 = vmatprep.subr.mxu0 0.0
    %1070 = vmatpush1.msra.mxu0 0.0
    %1071 = vmatprep.subr.mxu0 0.0
    %1072 = vmatpush1.msra.mxu0 0.0
    %1073 = vmatprep.subr.mxu0 0.0
    %1074 = vmatpush1.msra.mxu0 0.0
    %1075 = vmatprep.subr.mxu0 0.0
    %1076 = vmatpush1.msra.mxu0 0.0
    %1077 = vmatprep.subr.mxu0 0.0
    %1078 = vmatpush1.msra.mxu0 0.0
    %1079 = vmatprep.subr.mxu0 0.0
    %1080 = vmatpush1.msra.mxu0 0.0
    %1081 = vmatprep.subr.mxu0 0.0
    %1082 = vmatpush1.msra.mxu0 0.0
    %1083 = vmatprep.subr.mxu0 0.0
    %1084 = vmatpush1.msra.mxu0 0.0
    %1085 = vmatprep.subr.mxu0 0.0
    %1086 = vmatpush1.msra.mxu0 0.0
    %1087 = vmatprep.subr.mxu0 0.0
    %1088 = vmatpush1.msra.mxu0 0.0
    %1089 = vmatprep.subr.mxu0 0.0
    %1090 = vmatpush1.msra.mxu0 0.0
    %1091 = vmatprep.subr.mxu0 0.0
    %1092 = vmatpush1.msra.mxu0 0.0
    %1093 = vmatprep.subr.mxu0 0.0
    %1094 = vmatpush1.msra.mxu0 0.0
    %1095 = vmatprep.subr.mxu0 0.0
    %1096 = vmatpush1.msra.mxu0 0.0
    %1097 = vmatprep.subr.mxu0 0.0
    %1098 = vmatpush1.msra.mxu0 0.0
    %1099 = vmatprep.subr.mxu0 0.0
    %1100 = vmatpush1.msra.mxu0 0.0
    %1101 = vmatprep.subr.mxu0 0.0
    %1102 = vmatpush1.msra.mxu0 0.0
    %1103 = vmatprep.subr.mxu0 0.0
    %1104 = vmatpush1.msra.mxu0 0.0
    %1105 = vmatprep.subr.mxu0 0.0
    %1106 = vmatpush1.msra.mxu0 0.0
    %1107 = vmatprep.subr.mxu0 0.0
    %1108 = vmatpush1.msra.mxu0 0.0
    %1109 = vmatprep.subr.mxu0 0.0
    %1110 = vmatpush1.msra.mxu0 0.0
    %1111 = vmatprep.subr.mxu0 0.0
    %1112 = vmatpush1.msra.mxu0 0.0
    %1113 = vmatprep.subr.mxu0 0.0
    %1114 = vmatpush1.msra.mxu0 0.0
    %1115 = vmatprep.subr.mxu0 0.0
    %1116 = vmatpush1.msra.mxu0 0.0
    %1117 = vmatprep.subr.mxu0 0.0
    %1118 = vmatpush1.msra.mxu0 0.0
    %1119 = vmatprep.subr.mxu0 0.0
    %1120 = vmatpush1.msra.mxu0 0.0
    %1121 = vmatprep.mubr.f32.mxu0 0.0
    %1122 = vmatmul.mubr.f32.gmra.mrb[0].mxu0 %v1052
    %v1123 = vpop.f32.mrb[0].mxu0
    %v1124 = vadd.f32 0.0, %v1123
    %v1125 = vpop.f32.mrb[0].mxu0
    %1126 = vmatprep.mubr.f32.mxu0 0.0
    %1127 = vmatmul.mubr.f32.gmra.mrb[0].mxu0 %v1055
    %v1128 = vpop.f32.mrb[0].mxu0
    %v1129 = vadd.f32 0.0, %v1128
    %v1130 = vpop.f32.mrb[0].mxu0
    %1131 = vdwg.mxu0
    %v1133 = vsel %vm237, %v865, 0
    %v1136 = vsel %vm237, %v870, 0
    %1138 = vmatprep.subr.mxu0 0.0
    %1139 = vmatpush1.msra.mxu0 %v1048
    %1140 = vmatprep.subr.mxu0 0.0
    %1141 = vmatpush1.msra.mxu0 0.0
    %1142 = vmatprep.subr.mxu0 0.0
    %1143 = vmatpush1.msra.mxu0 0.0
    %1144 = vmatprep.subr.mxu0 0.0
    %1145 = vmatpush1.msra.mxu0 0.0
    %1146 = vmatprep.subr.mxu0 0.0
    %1147 = vmatpush1.msra.mxu0 0.0
    %1148 = vmatprep.subr.mxu0 0.0
    %1149 = vmatpush1.msra.mxu0 0.0
    %1150 = vmatprep.subr.mxu0 0.0
    %1151 = vmatpush1.msra.mxu0 0.0
    %1152 = vmatprep.subr.mxu0 0.0
    %1153 = vmatpush1.msra.mxu0 0.0
    %1154 = vmatprep.subr.mxu0 0.0
    %1155 = vmatpush1.msra.mxu0 0.0
    %1156 = vmatprep.subr.mxu0 0.0
    %1157 = vmatpush1.msra.mxu0 0.0
    %1158 = vmatprep.subr.mxu0 0.0
    %1159 = vmatpush1.msra.mxu0 0.0
    %1160 = vmatprep.subr.mxu0 0.0
    %1161 = vmatpush1.msra.mxu0 0.0
    %1162 = vmatprep.subr.mxu0 0.0
    %1163 = vmatpush1.msra.mxu0 0.0
    %1164 = vmatprep.subr.mxu0 0.0
    %1165 = vmatpush1.msra.mxu0 0.0
    %1166 = vmatprep.subr.mxu0 0.0
    %1167 = vmatpush1.msra.mxu0 0.0
    %1168 = vmatprep.subr.mxu0 0.0
    %1169 = vmatpush1.msra.mxu0 0.0
    %1170 = vmatprep.subr.mxu0 0.0
    %1171 = vmatpush1.msra.mxu0 0.0
    %1172 = vmatprep.subr.mxu0 0.0
    %1173 = vmatpush1.msra.mxu0 0.0
    %1174 = vmatprep.subr.mxu0 0.0
    %1175 = vmatpush1.msra.mxu0 0.0
    %1176 = vmatprep.subr.mxu0 0.0
    %1177 = vmatpush1.msra.mxu0 0.0
    %1178 = vmatprep.subr.mxu0 0.0
    %1179 = vmatpush1.msra.mxu0 0.0
    %1180 = vmatprep.subr.mxu0 0.0
    %1181 = vmatpush1.msra.mxu0 0.0
    %1182 = vmatprep.subr.mxu0 0.0
    %1183 = vmatpush1.msra.mxu0 0.0
    %1184 = vmatprep.subr.mxu0 0.0
    %1185 = vmatpush1.msra.mxu0 0.0
    %1186 = vmatprep.subr.mxu0 0.0
    %1187 = vmatpush1.msra.mxu0 0.0
    %1188 = vmatprep.subr.mxu0 0.0
    %1189 = vmatpush1.msra.mxu0 0.0
    %1190 = vmatprep.subr.mxu0 0.0
    %1191 = vmatpush1.msra.mxu0 0.0
    %1192 = vmatprep.subr.mxu0 0.0
    %1193 = vmatpush1.msra.mxu0 0.0
    %1194 = vmatprep.subr.mxu0 0.0
    %1195 = vmatpush1.msra.mxu0 0.0
    %1196 = vmatprep.subr.mxu0 0.0
    %1197 = vmatpush1.msra.mxu0 0.0
    %1198 = vmatprep.subr.mxu0 0.0
    %1199 = vmatpush1.msra.mxu0 0.0
    %1200 = vmatprep.subr.mxu0 0.0
    %1201 = vmatpush1.msra.mxu0 0.0
    %1202 = vmatprep.mubr.f32.mxu0 0.0
    %1203 = vmatmul.mubr.f32.gmra.mrb[0].mxu0 %v1133
    %v1204 = vpop.f32.mrb[0].mxu0
    %v1205 = vadd.f32 0.0, %v1204
    %v1206 = vpop.f32.mrb[0].mxu0
    %1207 = vmatprep.mubr.f32.mxu0 0.0
    %1208 = vmatmul.mubr.f32.gmra.mrb[0].mxu0 %v1136
    %v1209 = vpop.f32.mrb[0].mxu0
    %v1210 = vadd.f32 0.0, %v1209
    %v1211 = vpop.f32.mrb[0].mxu0
    %1212 = vdwg.mxu0
    %v1214 = vsel %vm237, %v952, 0
    %v1217 = vsel %vm237, %v957, 0
    %1219 = vmatprep.subr.mxu0 0.0
    %1220 = vmatpush1.msra.mxu0 %v1049
    %1221 = vmatprep.subr.mxu0 0.0
    %1222 = vmatpush1.msra.mxu0 0.0
    %1223 = vmatprep.subr.mxu0 0.0
    %1224 = vmatpush1.msra.mxu0 0.0
    %1225 = vmatprep.subr.mxu0 0.0
    %1226 = vmatpush1.msra.mxu0 0.0
    %1227 = vmatprep.subr.mxu0 0.0
    %1228 = vmatpush1.msra.mxu0 0.0
    %1229 = vmatprep.subr.mxu0 0.0
    %1230 = vmatpush1.msra.mxu0 0.0
    %1231 = vmatprep.subr.mxu0 0.0
    %1232 = vmatpush1.msra.mxu0 0.0
    %1233 = vmatprep.subr.mxu0 0.0
    %1234 = vmatpush1.msra.mxu0 0.0
    %1235 = vmatprep.subr.mxu0 0.0
    %1236 = vmatpush1.msra.mxu0 0.0
    %1237 = vmatprep.subr.mxu0 0.0
    %1238 = vmatpush1.msra.mxu0 0.0
    %1239 = vmatprep.subr.mxu0 0.0
    %1240 = vmatpush1.msra.mxu0 0.0
    %1241 = vmatprep.subr.mxu0 0.0
    %1242 = vmatpush1.msra.mxu0 0.0
    %1243 = vmatprep.subr.mxu0 0.0
    %1244 = vmatpush1.msra.mxu0 0.0
    %1245 = vmatprep.subr.mxu0 0.0
    %1246 = vmatpush1.msra.mxu0 0.0
    %1247 = vmatprep.subr.mxu0 0.0
    %1248 = vmatpush1.msra.mxu0 0.0
    %1249 = vmatprep.subr.mxu0 0.0
    %1250 = vmatpush1.msra.mxu0 0.0
    %1251 = vmatprep.subr.mxu0 0.0
    %1252 = vmatpush1.msra.mxu0 0.0
    %1253 = vmatprep.subr.mxu0 0.0
    %1254 = vmatpush1.msra.mxu0 0.0
    %1255 = vmatprep.subr.mxu0 0.0
    %1256 = vmatpush1.msra.mxu0 0.0
    %1257 = vmatprep.subr.mxu0 0.0
    %1258 = vmatpush1.msra.mxu0 0.0
    %1259 = vmatprep.subr.mxu0 0.0
    %1260 = vmatpush1.msra.mxu0 0.0
    %1261 = vmatprep.subr.mxu0 0.0
    %1262 = vmatpush1.msra.mxu0 0.0
    %1263 = vmatprep.subr.mxu0 0.0
    %1264 = vmatpush1.msra.mxu0 0.0
    %1265 = vmatprep.subr.mxu0 0.0
    %1266 = vmatpush1.msra.mxu0 0.0
    %1267 = vmatprep.subr.mxu0 0.0
    %1268 = vmatpush1.msra.mxu0 0.0
    %1269 = vmatprep.subr.mxu0 0.0
    %1270 = vmatpush1.msra.mxu0 0.0
    %1271 = vmatprep.subr.mxu0 0.0
    %1272 = vmatpush1.msra.mxu0 0.0
    %1273 = vmatprep.subr.mxu0 0.0
    %1274 = vmatpush1.msra.mxu0 0.0
    %1275 = vmatprep.subr.mxu0 0.0
    %1276 = vmatpush1.msra.mxu0 0.0
    %1277 = vmatprep.subr.mxu0 0.0
    %1278 = vmatpush1.msra.mxu0 0.0
    %1279 = vmatprep.subr.mxu0 0.0
    %1280 = vmatpush1.msra.mxu0 0.0
    %1281 = vmatprep.subr.mxu0 0.0
    %1282 = vmatpush1.msra.mxu0 0.0
    %1283 = vmatprep.mubr.f32.mxu0 0.0
    %1284 = vmatmul.mubr.f32.gmra.mrb[0].mxu0 %v1214
    %v1285 = vpop.f32.mrb[0].mxu0
    %v1286 = vadd.f32 0.0, %v1285
    %v1287 = vpop.f32.mrb[0].mxu0
    %1288 = vmatprep.mubr.f32.mxu0 0.0
    %1289 = vmatmul.mubr.f32.gmra.mrb[0].mxu0 %v1217
    %v1290 = vpop.f32.mrb[0].mxu0
    %v1291 = vadd.f32 0.0, %v1290
    %v1292 = vpop.f32.mrb[0].mxu0
    %1293 = vdwg.mxu0
    %v1295 = vsel %vm237, %v1039, 0
    %v1298 = vsel %vm237, %v1044, 0
    %1300 = vmatprep.subr.mxu0 0.0
    %1301 = vmatpush1.msra.mxu0 %v1050
    %1302 = vmatprep.subr.mxu0 0.0
    %1303 = vmatpush1.msra.mxu0 0.0
    %1304 = vmatprep.subr.mxu0 0.0
    %1305 = vmatpush1.msra.mxu0 0.0
    %1306 = vmatprep.subr.mxu0 0.0
    %1307 = vmatpush1.msra.mxu0 0.0
    %1308 = vmatprep.subr.mxu0 0.0
    %1309 = vmatpush1.msra.mxu0 0.0
    %1310 = vmatprep.subr.mxu0 0.0
    %1311 = vmatpush1.msra.mxu0 0.0
    %1312 = vmatprep.subr.mxu0 0.0
    %1313 = vmatpush1.msra.mxu0 0.0
    %1314 = vmatprep.subr.mxu0 0.0
    %1315 = vmatpush1.msra.mxu0 0.0
    %1316 = vmatprep.subr.mxu0 0.0
    %1317 = vmatpush1.msra.mxu0 0.0
    %1318 = vmatprep.subr.mxu0 0.0
    %1319 = vmatpush1.msra.mxu0 0.0
    %1320 = vmatprep.subr.mxu0 0.0
    %1321 = vmatpush1.msra.mxu0 0.0
    %1322 = vmatprep.subr.mxu0 0.0
    %1323 = vmatpush1.msra.mxu0 0.0
    %1324 = vmatprep.subr.mxu0 0.0
    %1325 = vmatpush1.msra.mxu0 0.0
    %1326 = vmatprep.subr.mxu0 0.0
    %1327 = vmatpush1.msra.mxu0 0.0
    %1328 = vmatprep.subr.mxu0 0.0
    %1329 = vmatpush1.msra.mxu0 0.0
    %1330 = vmatprep.subr.mxu0 0.0
    %1331 = vmatpush1.msra.mxu0 0.0
    %1332 = vmatprep.subr.mxu0 0.0
    %1333 = vmatpush1.msra.mxu0 0.0
    %1334 = vmatprep.subr.mxu0 0.0
    %1335 = vmatpush1.msra.mxu0 0.0
    %1336 = vmatprep.subr.mxu0 0.0
    %1337 = vmatpush1.msra.mxu0 0.0
    %1338 = vmatprep.subr.mxu0 0.0
    %1339 = vmatpush1.msra.mxu0 0.0
    %1340 = vmatprep.subr.mxu0 0.0
    %1341 = vmatpush1.msra.mxu0 0.0
    %1342 = vmatprep.subr.mxu0 0.0
    %1343 = vmatpush1.msra.mxu0 0.0
    %1344 = vmatprep.subr.mxu0 0.0
    %1345 = vmatpush1.msra.mxu0 0.0
    %1346 = vmatprep.subr.mxu0 0.0
    %1347 = vmatpush1.msra.mxu0 0.0
    %1348 = vmatprep.subr.mxu0 0.0
    %1349 = vmatpush1.msra.mxu0 0.0
    %1350 = vmatprep.subr.mxu0 0.0
    %1351 = vmatpush1.msra.mxu0 0.0
    %1352 = vmatprep.subr.mxu0 0.0
    %1353 = vmatpush1.msra.mxu0 0.0
    %1354 = vmatprep.subr.mxu0 0.0
    %1355 = vmatpush1.msra.mxu0 0.0
    %1356 = vmatprep.subr.mxu0 0.0
    %1357 = vmatpush1.msra.mxu0 0.0
    %1358 = vmatprep.subr.mxu0 0.0
    %1359 = vmatpush1.msra.mxu0 0.0
    %1360 = vmatprep.subr.mxu0 0.0
    %1361 = vmatpush1.msra.mxu0 0.0
    %1362 = vmatprep.subr.mxu0 0.0
    %1363 = vmatpush1.msra.mxu0 0.0
    %1364 = vmatprep.mubr.f32.mxu0 0.0
    %1365 = vmatmul.mubr.f32.gmra.mrb[0].mxu0 %v1295
    %v1366 = vpop.f32.mrb[0].mxu0
    %v1367 = vadd.f32 0.0, %v1366
    %v1368 = vpop.f32.mrb[0].mxu0
    %1369 = vmatprep.mubr.f32.mxu0 0.0
    %1370 = vmatmul.mubr.f32.gmra.mrb[0].mxu0 %v1298
    %v1371 = vpop.f32.mrb[0].mxu0
    %v1372 = vadd.f32 0.0, %v1371
    %v1373 = vpop.f32.mrb[0].mxu0
    %1374 = vdwg.mxu0
    %v1375 = vsel %vm89, %v1124, 0.0
    %v1376 = vsel %vm89, %v1205, 0.0
    %v1377 = vadd.f32 %v1375, %v1376
    %v1378 = vsel %vm89, %v1286, 0.0
    %v1379 = vadd.f32 %v1377, %v1378
    %v1380 = vsel %vm89, %v1367, 0.0
    %v1381 = vadd.f32 %v1379, %v1380
    %v1382 = vsel %vm89, %v1129, 0.0
    %v1383 = vsel %vm89, %v1210, 0.0
    %v1384 = vadd.f32 %v1382, %v1383
    %v1385 = vsel %vm89, %v1291, 0.0
    %v1386 = vadd.f32 %v1384, %v1385
    %v1387 = vsel %vm89, %v1372, 0.0
    %v1388 = vadd.f32 %v1386, %v1387
    %v1389 = vld [vmem:[%s6] sm:$0x1]
    %v1391 = vlaneseq
    %v1392 = vshrl.u32 %v1391, 7
    %v1393 = vsub.s32 0, %v1392
    %v1394 = vrot.slane %v1389, %v1393
    %v1396 = vadd.f32 %v1381, %v1394
    %v1397 = vadd.f32 %v1388, %v1394
    %v1398 = vadd.f32 %v1396, %v79
    %v1399 = vadd.f32 %v1397, %v80
    %v1400 = vld [vmem:[%s7] sm:$0x1]
    %v1401 = vld [vmem:[%s8] sm:$0x1]
    %v1402 = vsel %vm89, %v1398, 0.0
    %1403 = vadd.xlane.f32.xlu0 %v1402
    %v1404 = vpop.xlane.xlu0 %1403
    %v1405 = vsel %vm89, %v1399, 0.0
    %1406 = vadd.xlane.f32.xlu0 %v1405
    %v1407 = vpop.xlane.xlu0 %1406
    %v1408 = vrcp.pop 32.0
    %v1409 = vmul.f32 %v1404, %v1408
    %v1410 = vmul.f32 %v1407, %v1408
    %v1411 = vsub.f32 %v1398, %v1409
    %v1412 = vsub.f32 %v1399, %v1410
    %v1413 = vmul.f32 %v1411, %v1411
    %v1414 = vmul.f32 %v1412, %v1412
    %v1415 = vsel %vm89, %v1413, 0.0
    %1416 = vadd.xlane.f32.xlu0 %v1415
    %v1417 = vpop.xlane.xlu0 %1416
    %v1418 = vsel %vm89, %v1414, 0.0
    %1419 = vadd.xlane.f32.xlu0 %v1418
    %v1420 = vpop.xlane.xlu0 %1419
    %v1421 = vmul.f32 %v1417, %v1408
    %v1422 = vmul.f32 %v1420, %v1408
    %v1423 = vadd.f32 %v1421, 1e-07
    %v1424 = vadd.f32 %v1422, 1e-07
    %v1425 = vrsqrt.pop %v1423
    %v1426 = vrsqrt.pop %v1424
    %v1427 = vmul.f32 %v1411, %v1425
    %v1428 = vmul.f32 %v1412, %v1426
    %v1430 = vlaneseq
    %v1431 = vshrl.u32 %v1430, 7
    %v1432 = vsub.s32 0, %v1431
    %v1433 = vrot.slane %v1400, %v1432
    %v1435 = vmul.f32 %v1427, %v1433
    %v1436 = vmul.f32 %v1428, %v1433
    %v1438 = vlaneseq
    %v1439 = vshrl.u32 %v1438, 7
    %v1440 = vsub.s32 0, %v1439
    %v1441 = vrot.slane %v1401, %v1440
    %v1443 = vadd.f32 %v1435, %v1441
    %v1444 = vadd.f32 %v1436, %v1441
    %v1445 = vld [vmem:[%s9] sm:$0xff]
    %v1446 = vld [vmem:[%s9 + $0x8] sm:$0xff]
    %v1447 = vld [vmem:[%s9 + $0x10] sm:$0xff]
    %v1448 = vld [vmem:[%s9 + $0x18] sm:$0xff]
    %v1449 = vld [vmem:[%s10] sm:$0x1]
    %v1451 = vlaneseq
    %v1452 = vshrl.u32 %v1451, 7
    %v1453 = vsub.s32 0, %v1452
    %v1454 = vrot.slane %v1449, %v1453
    %v1457 = vsel %vm89, %v1443, 0
    %v1460 = vsel %vm89, %v1444, 0
    %1462 = vmatprep.subr.mxu0 0.0
    %1463 = vmatpush1.msra.mxu0 %v1445
    %1464 = vmatprep.subr.mxu0 0.0
    %1465 = vmatpush1.msra.mxu0 %v1446
    %1466 = vmatprep.subr.mxu0 0.0
    %1467 = vmatpush1.msra.mxu0 %v1447
    %1468 = vmatprep.subr.mxu0 0.0
    %1469 = vmatpush1.msra.mxu0 %v1448
    %1470 = vmatprep.subr.mxu0 0.0
    %1471 = vmatpush1.msra.mxu0 0.0
    %1472 = vmatprep.subr.mxu0 0.0
    %1473 = vmatpush1.msra.mxu0 0.0
    %1474 = vmatprep.subr.mxu0 0.0
    %1475 = vmatpush1.msra.mxu0 0.0
    %1476 = vmatprep.subr.mxu0 0.0
    %1477 = vmatpush1.msra.mxu0 0.0
    %1478 = vmatprep.subr.mxu0 0.0
    %1479 = vmatpush1.msra.mxu0 0.0
    %1480 = vmatprep.subr.mxu0 0.0
    %1481 = vmatpush1.msra.mxu0 0.0
    %1482 = vmatprep.subr.mxu0 0.0
    %1483 = vmatpush1.msra.mxu0 0.0
    %1484 = vmatprep.subr.mxu0 0.0
    %1485 = vmatpush1.msra.mxu0 0.0
    %1486 = vmatprep.subr.mxu0 0.0
    %1487 = vmatpush1.msra.mxu0 0.0
    %1488 = vmatprep.subr.mxu0 0.0
    %1489 = vmatpush1.msra.mxu0 0.0
    %1490 = vmatprep.subr.mxu0 0.0
    %1491 = vmatpush1.msra.mxu0 0.0
    %1492 = vmatprep.subr.mxu0 0.0
    %1493 = vmatpush1.msra.mxu0 0.0
    %1494 = vmatprep.subr.mxu0 0.0
    %1495 = vmatpush1.msra.mxu0 0.0
    %1496 = vmatprep.subr.mxu0 0.0
    %1497 = vmatpush1.msra.mxu0 0.0
    %1498 = vmatprep.subr.mxu0 0.0
    %1499 = vmatpush1.msra.mxu0 0.0
    %1500 = vmatprep.subr.mxu0 0.0
    %1501 = vmatpush1.msra.mxu0 0.0
    %1502 = vmatprep.subr.mxu0 0.0
    %1503 = vmatpush1.msra.mxu0 0.0
    %1504 = vmatprep.subr.mxu0 0.0
    %1505 = vmatpush1.msra.mxu0 0.0
    %1506 = vmatprep.subr.mxu0 0.0
    %1507 = vmatpush1.msra.mxu0 0.0
    %1508 = vmatprep.subr.mxu0 0.0
    %1509 = vmatpush1.msra.mxu0 0.0
    %1510 = vmatprep.subr.mxu0 0.0
    %1511 = vmatpush1.msra.mxu0 0.0
    %1512 = vmatprep.subr.mxu0 0.0
    %1513 = vmatpush1.msra.mxu0 0.0
    %1514 = vmatprep.subr.mxu0 0.0
    %1515 = vmatpush1.msra.mxu0 0.0
    %1516 = vmatprep.subr.mxu0 0.0
    %1517 = vmatpush1.msra.mxu0 0.0
    %1518 = vmatprep.subr.mxu0 0.0
    %1519 = vmatpush1.msra.mxu0 0.0
    %1520 = vmatprep.subr.mxu0 0.0
    %1521 = vmatpush1.msra.mxu0 0.0
    %1522 = vmatprep.subr.mxu0 0.0
    %1523 = vmatpush1.msra.mxu0 0.0
    %1524 = vmatprep.subr.mxu0 0.0
    %1525 = vmatpush1.msra.mxu0 0.0
    %1526 = vmatprep.mubr.f32.mxu0 0.0
    %1527 = vmatmul.mubr.f32.gmra.mrb[0].mxu0 %v1457
    %v1528 = vpop.f32.mrb[0].mxu0
    %v1529 = vadd.f32 %v1454, %v1528
    %v1530 = vpop.f32.mrb[0].mxu0
    %1531 = vmatprep.mubr.f32.mxu0 0.0
    %1532 = vmatmul.mubr.f32.gmra.mrb[0].mxu0 %v1460
    %v1533 = vpop.f32.mrb[0].mxu0
    %v1534 = vadd.f32 %v1454, %v1533
    %v1535 = vpop.f32.mrb[0].mxu0
    %1536 = vdwg.mxu0
    %v1537 = vmul.f32 %v1529, 0.5
    %v1538 = vmul.f32 %v1534, 0.5
    %v1539 = vmul.f32 %v1529, 0.70710677
    %v1540 = vmul.f32 %v1534, 0.70710677
    %v1541 = verf.f32.pop %v1539
    %v1542 = verf.f32.pop %v1540
    %v1543 = vadd.f32 %v1541, 1.0
    %v1544 = vadd.f32 %v1542, 1.0
    %v1545 = vmul.f32 %v1537, %v1543
    %v1546 = vmul.f32 %v1538, %v1544
    %v1547 = vld [vmem:[%s11] sm:$0xff]
    %v1548 = vld [vmem:[%s11 + $0x8] sm:$0xff]
    %v1549 = vld [vmem:[%s11 + $0x10] sm:$0xff]
    %v1550 = vld [vmem:[%s11 + $0x18] sm:$0xff]
    %v1551 = vld [vmem:[%s11 + $0x20] sm:$0xff]
    %v1552 = vld [vmem:[%s11 + $0x28] sm:$0xff]
    %v1553 = vld [vmem:[%s11 + $0x30] sm:$0xff]
    %v1554 = vld [vmem:[%s11 + $0x38] sm:$0xff]
    %v1555 = vld [vmem:[%s12] sm:$0x1]
    %v1557 = vlaneseq
    %v1558 = vshrl.u32 %v1557, 7
    %v1559 = vsub.s32 0, %v1558
    %v1560 = vrot.slane %v1555, %v1559
    %vm1562 = vcmask 523264
    %v1564 = vsel %vm1562, %v1545, 0
    %v1567 = vsel %vm1562, %v1546, 0
    %1569 = vmatprep.subr.mxu0 0.0
    %1570 = vmatpush1.msra.mxu0 %v1547
    %1571 = vmatprep.subr.mxu0 0.0
    %1572 = vmatpush1.msra.mxu0 %v1548
    %1573 = vmatprep.subr.mxu0 0.0
    %1574 = vmatpush1.msra.mxu0 %v1549
    %1575 = vmatprep.subr.mxu0 0.0
    %1576 = vmatpush1.msra.mxu0 %v1550
    %1577 = vmatprep.subr.mxu0 0.0
    %1578 = vmatpush1.msra.mxu0 %v1551
    %1579 = vmatprep.subr.mxu0 0.0
    %1580 = vmatpush1.msra.mxu0 %v1552
    %1581 = vmatprep.subr.mxu0 0.0
    %1582 = vmatpush1.msra.mxu0 %v1553
    %1583 = vmatprep.subr.mxu0 0.0
    %1584 = vmatpush1.msra.mxu0 %v1554
    %1585 = vmatprep.subr.mxu0 0.0
    %1586 = vmatpush1.msra.mxu0 0.0
    %1587 = vmatprep.subr.mxu0 0.0
    %1588 = vmatpush1.msra.mxu0 0.0
    %1589 = vmatprep.subr.mxu0 0.0
    %1590 = vmatpush1.msra.mxu0 0.0
    %1591 = vmatprep.subr.mxu0 0.0
    %1592 = vmatpush1.msra.mxu0 0.0
    %1593 = vmatprep.subr.mxu0 0.0
    %1594 = vmatpush1.msra.mxu0 0.0
    %1595 = vmatprep.subr.mxu0 0.0
    %1596 = vmatpush1.msra.mxu0 0.0
    %1597 = vmatprep.subr.mxu0 0.0
    %1598 = vmatpush1.msra.mxu0 0.0
    %1599 = vmatprep.subr.mxu0 0.0
    %1600 = vmatpush1.msra.mxu0 0.0
    %1601 = vmatprep.subr.mxu0 0.0
    %1602 = vmatpush1.msra.mxu0 0.0
    %1603 = vmatprep.subr.mxu0 0.0
    %1604 = vmatpush1.msra.mxu0 0.0
    %1605 = vmatprep.subr.mxu0 0.0
    %1606 = vmatpush1.msra.mxu0 0.0
    %1607 = vmatprep.subr.mxu0 0.0
    %1608 = vmatpush1.msra.mxu0 0.0
    %1609 = vmatprep.subr.mxu0 0.0
    %1610 = vmatpush1.msra.mxu0 0.0
    %1611 = vmatprep.subr.mxu0 0.0
    %1612 = vmatpush1.msra.mxu0 0.0
    %1613 = vmatprep.subr.mxu0 0.0
    %1614 = vmatpush1.msra.mxu0 0.0
    %1615 = vmatprep.subr.mxu0 0.0
    %1616 = vmatpush1.msra.mxu0 0.0
    %1617 = vmatprep.subr.mxu0 0.0
    %1618 = vmatpush1.msra.mxu0 0.0
    %1619 = vmatprep.subr.mxu0 0.0
    %1620 = vmatpush1.msra.mxu0 0.0
    %1621 = vmatprep.subr.mxu0 0.0
    %1622 = vmatpush1.msra.mxu0 0.0
    %1623 = vmatprep.subr.mxu0 0.0
    %1624 = vmatpush1.msra.mxu0 0.0
    %1625 = vmatprep.subr.mxu0 0.0
    %1626 = vmatpush1.msra.mxu0 0.0
    %1627 = vmatprep.subr.mxu0 0.0
    %1628 = vmatpush1.msra.mxu0 0.0
    %1629 = vmatprep.subr.mxu0 0.0
    %1630 = vmatpush1.msra.mxu0 0.0
    %1631 = vmatprep.subr.mxu0 0.0
    %1632 = vmatpush1.msra.mxu0 0.0
    %1633 = vmatprep.mubr.f32.mxu0 0.0
    %1634 = vmatmul.mubr.f32.gmra.mrb[0].mxu0 %v1564
    %v1635 = vpop.f32.mrb[0].mxu0
    %v1636 = vadd.f32 %v1560, %v1635
    %v1637 = vpop.f32.mrb[0].mxu0
    %1638 = vmatprep.mubr.f32.mxu0 0.0
    %1639 = vmatmul.mubr.f32.gmra.mrb[0].mxu0 %v1567
    %v1640 = vpop.f32.mrb[0].mxu0
    %v1641 = vadd.f32 %v1560, %v1640
    %v1642 = vpop.f32.mrb[0].mxu0
    %1643 = vdwg.mxu0
    %v1644 = vadd.f32 %v1636, %v1443
    %v1645 = vadd.f32 %v1641, %v1444
    %v1646 = vld [vmem:[%s13] sm:$0x1]
    %v1647 = vld [vmem:[%s14] sm:$0x1]
    %v1648 = vsel %vm89, %v1644, 0.0
    %1649 = vadd.xlane.f32.xlu0 %v1648
    %v1650 = vpop.xlane.xlu0 %1649
    %v1651 = vsel %vm89, %v1645, 0.0
    %1652 = vadd.xlane.f32.xlu0 %v1651
    %v1653 = vpop.xlane.xlu0 %1652
    %v1654 = vmul.f32 %v1650, %v1408
    %v1655 = vmul.f32 %v1653, %v1408
    %v1656 = vsub.f32 %v1644, %v1654
    %v1657 = vsub.f32 %v1645, %v1655
    %v1658 = vmul.f32 %v1656, %v1656
    %v1659 = vmul.f32 %v1657, %v1657
    %v1660 = vsel %vm89, %v1658, 0.0
    %1661 = vadd.xlane.f32.xlu0 %v1660
    %v1662 = vpop.xlane.xlu0 %1661
    %v1663 = vsel %vm89, %v1659, 0.0
    %1664 = vadd.xlane.f32.xlu0 %v1663
    %v1665 = vpop.xlane.xlu0 %1664
    %v1666 = vmul.f32 %v1662, %v1408
    %v1667 = vmul.f32 %v1665, %v1408
    %v1668 = vadd.f32 %v1666, 1e-07
    %v1669 = vadd.f32 %v1667, 1e-07
    %v1670 = vrsqrt.pop %v1668
    %v1671 = vrsqrt.pop %v1669
    %v1672 = vmul.f32 %v1656, %v1670
    %v1673 = vmul.f32 %v1657, %v1671
    %v1675 = vlaneseq
    %v1676 = vshrl.u32 %v1675, 7
    %v1677 = vsub.s32 0, %v1676
    %v1678 = vrot.slane %v1646, %v1677
    %v1680 = vmul.f32 %v1672, %v1678
    %v1681 = vmul.f32 %v1673, %v1678
    %v1683 = vlaneseq
    %v1684 = vshrl.u32 %v1683, 7
    %v1685 = vsub.s32 0, %v1684
    %v1686 = vrot.slane %v1647, %v1685
    %v1688 = vadd.f32 %v1680, %v1686
    %v1689 = vadd.f32 %v1681, %v1686
    %1690 = vst.msk [vmem:[#allocation7] sm:$0xff] %vm89, %v1688
    %1691 = vst.msk [vmem:[#allocation7 + $0x8] sm:$0xff] %vm89, %v1689
    // Predicated region
    $region70: #{tpu_custom_call.1} parent=1 // pred_check
      _
    $region71: #{tpu_custom_call.1} parent=1 // pred_check_branch
      %1693 = sbr.rel (0) target = $region73
    $region72: #{tpu_custom_call.1} parent=1 // pred_region
      %s1695 = ssub.s32 256, 256
      %1696 = vsyncadd [#allocation4], %s1695
      %s1697 = sshll.u32 [#allocation7], 4
      %s1698 = int_to_ptr.vmem [resolvable:$true] %s1697
      %1703 = dma.vmem_to_hbm [thread:$0]  %s1698, 256, %s15, [#allocation4], 128, 128, 8
    $region73: #{tpu_custom_call.1} parent=1 // pred_fallthru
      _
    // Predicated region
    $region74: #{tpu_custom_call.1} parent=1 // pred_check
      _
    $region75: #{tpu_custom_call.1} parent=1 // pred_check_branch
      %1705 = sbr.rel (0) target = $region77
    $region76: #{tpu_custom_call.1} parent=1 // pred_region
      %1706 = dma.done [#allocation4], 256
    $region77: #{tpu_custom_call.1} parent=1 // pred_fallthru
      _
    %1707 = vsyncpa [#allocation3], 1
    %1708 = vsyncpa [#allocation6], 1
    %1709 = vsyncpa [#allocation4], 1

</llo_original>
